<compile_context>
chip_gen: v6e
topology: v6e:2x2x1
jax: 0.10.0
libtpu: 0.0.40
codegen_flags: <defaults>
</compile_context>

<pallas_src>
import jax
import jax.numpy as jnp
from jax import lax
from jax.experimental import pallas as pl
from jax.experimental.pallas import tpu as pltpu


STAGE_CHANNELS = (3, 16, 32, 48, 64)   # 3 -> 16 -> 32 -> 48 -> nb_ft=64
NB_FT = STAGE_CHANNELS[-1]
NUM_CLASSES = 1
C_PAD = 128        # feature (sublane) padding for stages 2-4 and the head
C_IN_PAD = 8       # padding of the 3 input channels (sublane axis of the slab)
MAX_TILE_N = 4096  # pixels per grid step


def _round_up(x, m):
    return ((x + m - 1) // m) * m


# ----------------------------------------------------------------------------
# Fused kernel: stage1 (VPU MADs) -> stages 2-4 (bf16 MXU) -> masked pooling
#               -> Linear head.  Everything is feature-major: (features, pixels).
# ----------------------------------------------------------------------------
def _make_kernel(cin, hw4, tile_n, need_mask):
    inv_hw4 = 1.0 / float(hw4)

    def kernel(x_ref, w1t_ref, wstk_ref, b_ref, wh_ref, bh_ref, o_ref, acc_ref):
        # x_ref   : (C_IN_PAD, tile_n) bf16   surviving pixels of one batch tile
        # w1t_ref : (C_PAD, C_IN_PAD)  f32    stage-1 weight^T (mean/std folded)
        # wstk_ref: (3, C_PAD, C_PAD)  bf16   stage 2..4 weights^T (zero-padded)
        # b_ref   : (C_PAD, 8)         f32    stage biases in columns 0..3
        # wh_ref  : (C_PAD, C_PAD)     f32    head weight (features x classes)
        # bh_ref  : (1, C_PAD)         f32    head bias (classes on lanes)
        # o_ref   : (1, C_PAD)         f32    per-batch logits (lane-dense)
        # acc_ref : (C_PAD, 1)         f32    resident pooled-sum accumulator
        t = pl.program_id(1)

        @pl.when(t == 0)
        def _():
            acc_ref[...] = jnp.zeros_like(acc_ref)

        xf = x_ref[...].astype(jnp.float32)                   # (C_IN_PAD, tile_n)

        # Stage 1 on the VPU: cin real channels -> broadcast multiply-adds.
        h = b_ref[:, 0:1]                                     # (C_PAD, 1)
        for k in range(cin):
            h = h + w1t_ref[:, k:k + 1] * xf[k:k + 1, :]      # (C_PAD, tile_n)
        h = jnp.maximum(h, 0.0).astype(jnp.bfloat16)

        # Stages 2-4 on the MXU: bf16 operands, f32 accumulation.
        for s in range(3):
            h = jnp.dot(wstk_ref[s], h, preferred_element_type=jnp.float32)
            h = jnp.maximum(h + b_ref[:, s + 1:s + 2], 0.0)
            if s < 2:
                h = h.astype(jnp.bfloat16)
        # h is now x4 for this tile, f32, (C_PAD, tile_n); padded feature rows are 0.

        if need_mask:  # zero out padded pixel columns before pooling
            col = lax.broadcasted_iota(jnp.int32, (1, tile_n), 1) + t * tile_n
            h = jnp.where(col < hw4, h, 0.0)

        acc_ref[...] += jnp.sum(h, axis=1, keepdims=True)      # (C_PAD, 1)

        @pl.when(t == pl.num_programs(1) - 1)
        def _():
            pooled = acc_ref[...] * inv_hw4                    # (C_PAD, 1) f32
            # head: logits[c] = sum_f W[f, c] * pooled[f] + b[c]   (VPU + XLU)
            logits = jnp.sum(wh_ref[...] * pooled, axis=0, keepdims=True)
            o_ref[...] = logits + bh_ref[...]                  # (1, C_PAD)

    return kernel


# ----------------------------------------------------------------------------
# Parameters (folding, transposing, padding, bf16 cast done ONCE at init)
# ----------------------------------------------------------------------------
def init_params(key):
    img_mean = jnp.array([0.485, 0.456, 0.406], dtype=jnp.float32)
    img_std = jnp.array([0.229, 0.224, 0.225], dtype=jnp.float32)

    keys = jax.random.split(key, 5)  # 4 stages + head
    stage_wT = []
    b_stack = jnp.zeros((C_PAD, 8), jnp.float32)
    for s in range(4):
        cin, cout = STAGE_CHANNELS[s], STAGE_CHANNELS[s + 1]
        kw, kb = jax.random.split(keys[s])
        scale = 1.0 / jnp.sqrt(jnp.float32(cin))
        w = jax.random.uniform(kw, (cin, cout), jnp.float32, -scale, scale)
        b = jax.random.uniform(kb, (cout,), jnp.float32, -scale, scale)
        if s == 0:
            # Fold (x - mean)/std into the stage-1 weights/bias:
            #   ((x-mean)/std) @ w + b == x @ (w/std[:,None]) + (b - (mean/std) @ w)
            w = w / img_std[:, None]
            b = b - (img_mean / img_std) @ (w * img_std[:, None])  # original w
        b_stack = b_stack.at[:cout, s].set(b)
        stage_wT.append(w.T)                                   # (cout, cin)

    # Stage-1 transposed weight: (C_PAD, C_IN_PAD) f32 (used on the VPU).
    w1t = jnp.zeros((C_PAD, C_IN_PAD), jnp.float32)
    w1t = w1t.at[:STAGE_CHANNELS[1], :STAGE_CHANNELS[0]].set(stage_wT[0])

    # Stages 2-4 transposed weights, stacked & zero-padded, bf16 for the MXU.
    w_stack = jnp.zeros((3, C_PAD, C_PAD), jnp.float32)
    for s in range(1, 4):
        cout, cin = stage_wT[s].shape
        w_stack = w_stack.at[s - 1, :cout, :cin].set(stage_wT[s])
    w_stack = w_stack.astype(jnp.bfloat16)

    # Head (kept f32: negligible work, full precision).
    kw, kb = jax.random.split(keys[4])
    scale = 1.0 / jnp.sqrt(jnp.float32(NB_FT))
    wl = jax.random.uniform(kw, (NB_FT, NUM_CLASSES), jnp.float32, -scale, scale)
    bl = jax.random.uniform(kb, (NUM_CLASSES,), jnp.float32, -scale, scale)
    w_head = jnp.zeros((C_PAD, C_PAD), jnp.float32).at[:NB_FT, :NUM_CLASSES].set(wl)
    b_head = jnp.zeros((1, C_PAD), jnp.float32).at[0, :NUM_CLASSES].set(bl)

    return {"w1t": w1t, "w_stack": w_stack, "b_stack": b_stack,
            "w_head": w_head, "b_head": b_head}


# ----------------------------------------------------------------------------
# Forward
# ----------------------------------------------------------------------------
@jax.jit
def sartorius_forward(x_nchw, params):
    x = x_nchw.astype(jnp.float32)
    bsz, cin, hgt, wid = x.shape
    assert cin <= C_IN_PAD, "input channels must fit the 8-sublane slab"

    # ceil-division matches the 4x stride-2 (::2) subsampling for any H, W
    hh, ww = -(-hgt // 16), -(-wid // 16)
    hw4 = hh * ww

    if hw4 <= MAX_TILE_N:
        tile_n = _round_up(hw4, 128)
        n_pad = tile_n
    else:
        tile_n = MAX_TILE_N
        n_pad = _round_up(hw4, MAX_TILE_N)
    num_tiles = n_pad // tile_n

    # Surviving pixels only, channels on sublanes, pixels on lanes:
    # compact (B, 8, n_pad) bf16 slab (no lane padding in HBM, no transpose).
    x_sub = x[:, :, ::16, ::16].reshape(bsz, cin, hw4)
    slab = jnp.pad(x_sub, ((0, 0), (0, C_IN_PAD - cin), (0, n_pad - hw4)))
    slab = slab.astype(jnp.bfloat16)

    kernel = _make_kernel(cin, hw4, tile_n, need_mask=(n_pad != hw4))

    def full(shape):
        return pl.BlockSpec(shape, lambda b, t, _s=shape: (0,) * len(_s))

    out = pl.pallas_call(
        kernel,
        out_shape=jax.ShapeDtypeStruct((bsz, 1, C_PAD), jnp.float32),
        grid=(bsz, num_tiles),
        in_specs=[
            pl.BlockSpec((None, C_IN_PAD, tile_n), lambda b, t: (b, 0, t)),  # x slab
            full((C_PAD, C_IN_PAD)),       # stage-1 weight^T (f32)
            full((3, C_PAD, C_PAD)),       # stage 2-4 weights^T (bf16)
            full((C_PAD, 8)),              # stage biases (f32)
            full((C_PAD, C_PAD)),          # head weight (f32)
            full((1, C_PAD)),              # head bias (f32)
        ],
        # Per-batch output block, resident across the pixel-reduction axis.
        out_specs=pl.BlockSpec((None, 1, C_PAD), lambda b, t: (b, 0, 0)),
        scratch_shapes=[pltpu.VMEM((C_PAD, 1), jnp.float32)],
        compiler_params=pltpu.CompilerParams(
            dimension_semantics=("parallel", "arbitrary"),   # batch // on v7x
            vmem_limit_bytes=32 * 1024 * 1024,
        ),
    )(slab, params["w1t"], params["w_stack"], params["b_stack"],
      params["w_head"], params["b_head"])

    # return logits.squeeze()
    return jnp.squeeze(out[:, 0, :NUM_CLASSES])


if __name__ == "__main__":
    key = jax.random.PRNGKey(0)
    k_params, k_x = jax.random.split(key)
    params = init_params(k_params)

    # BS x 3 x H x W input image, as in the PyTorch module docstring.
    x = jax.random.normal(k_x, (2, 3, 32, 32), dtype=jnp.float32)

    out = jax.block_until_ready(sartorius_forward(x, params))
    assert out.shape == (2,), f"unexpected output shape {out.shape}"
    assert bool(jnp.all(jnp.isfinite(out))), "non-finite logits"
    print("KERNEL_OK")
</pallas_src>

<mosaic_0001>
module attributes {stable_mosaic.version = 11 : i64} {
  func.func @kernel(%arg0: i32, %arg1: i32, %arg2: memref<1x8x128xbf16, #tpu.memory_space<vmem>>, %arg3: memref<128x8xf32, #tpu.memory_space<vmem>>, %arg4: memref<3x128x128xbf16, #tpu.memory_space<vmem>>, %arg5: memref<128x8xf32, #tpu.memory_space<vmem>>, %arg6: memref<128x128xf32, #tpu.memory_space<vmem>>, %arg7: memref<1x128xf32, #tpu.memory_space<vmem>>, %arg8: memref<1x1x128xf32, #tpu.memory_space<vmem>>, %arg9: memref<128x1xf32, #tpu.memory_space<vmem>>) attributes {dimension_semantics = [#tpu.dimension_semantics<parallel>, #tpu.dimension_semantics<arbitrary>], iteration_bounds = array<i64: 2, 1>, scalar_prefetch = 0 : i64, scratch_operands = 1 : i64, tpu.core_type = #tpu.core_type<tc>, window_params = [{transform_indices = @transform_0, window_bounds = array<i64: 1, 8, 128>}, {pipeline_mode = #tpu.pipeline_mode<synchronous>, transform_indices = @transform_1, window_bounds = array<i64: 128, 8>}, {pipeline_mode = #tpu.pipeline_mode<synchronous>, transform_indices = @transform_2, window_bounds = array<i64: 3, 128, 128>}, {pipeline_mode = #tpu.pipeline_mode<synchronous>, transform_indices = @transform_3, window_bounds = array<i64: 128, 8>}, {pipeline_mode = #tpu.pipeline_mode<synchronous>, transform_indices = @transform_4, window_bounds = array<i64: 128, 128>}, {pipeline_mode = #tpu.pipeline_mode<synchronous>, transform_indices = @transform_5, window_bounds = array<i64: 1, 128>}, {transform_indices = @transform_6, window_bounds = array<i64: 1, 1, 128>}]} {
    %c0_i32 = arith.constant 0 : i32
    %0 = arith.cmpi eq, %arg1, %c0_i32 : i32
    %1 = arith.extui %0 : i1 to i32
    %c0_i32_0 = arith.constant 0 : i32
    %2 = arith.cmpi ne, %1, %c0_i32_0 : i32
    scf.if %2 {
      %cst_37 = arith.constant 0.000000e+00 : f32
      %73 = vector.broadcast %cst_37 : f32 to vector<128x1xf32>
      %c0_38 = arith.constant 0 : index
      %c0_39 = arith.constant 0 : index
      %74 = vector.load %arg9[%c0_38, %c0_39] : memref<128x1xf32, #tpu.memory_space<vmem>>, vector<128x1xf32>
      tpu.vector_store %arg9[%c0_38, %c0_39], %73 {strides = array<i32>} : memref<128x1xf32, #tpu.memory_space<vmem>>, vector<128x1xf32>,
    } else {
    }
    %c0 = arith.constant 0 : index
    %c0_1 = arith.constant 0 : index
    %c0_2 = arith.constant 0 : index
    %3 = vector.load %arg2[%c0, %c0_1, %c0_2] : memref<1x8x128xbf16, #tpu.memory_space<vmem>>, vector<1x8x128xbf16>
    %4 = vector.shape_cast %3 : vector<1x8x128xbf16> to vector<8x128xbf16>
    %5 = arith.extf %4 : vector<8x128xbf16> to vector<8x128xf32>
    %c0_3 = arith.constant 0 : index
    %c0_4 = arith.constant 0 : index
    %6 = vector.load %arg5[%c0_3, %c0_4] : memref<128x8xf32, #tpu.memory_space<vmem>>, vector<128x1xf32>
    %c0_5 = arith.constant 0 : index
    %c0_6 = arith.constant 0 : index
    %7 = vector.load %arg3[%c0_5, %c0_6] : memref<128x8xf32, #tpu.memory_space<vmem>>, vector<128x1xf32>
    %8 = vector.extract_strided_slice %5 {offsets = [0, 0], sizes = [1, 128], strides = [1, 1]} : vector<8x128xf32> to vector<1x128xf32>
    %9 = vector.broadcast %7 : vector<128x1xf32> to vector<128x128xf32>
    %10 = vector.broadcast %8 : vector<1x128xf32> to vector<128x128xf32>
    %11 = arith.mulf %9, %10 : vector<128x128xf32>
    %12 = vector.broadcast %6 : vector<128x1xf32> to vector<128x128xf32>
    %13 = arith.addf %12, %11 : vector<128x128xf32>
    %c0_7 = arith.constant 0 : index
    %c1 = arith.constant 1 : index
    %14 = vector.load %arg3[%c0_7, %c1] : memref<128x8xf32, #tpu.memory_space<vmem>>, vector<128x1xf32>
    %15 = vector.extract_strided_slice %5 {offsets = [1, 0], sizes = [1, 128], strides = [1, 1]} : vector<8x128xf32> to vector<1x128xf32>
    %16 = vector.broadcast %14 : vector<128x1xf32> to vector<128x128xf32>
    %17 = vector.broadcast %15 : vector<1x128xf32> to vector<128x128xf32>
    %18 = arith.mulf %16, %17 : vector<128x128xf32>
    %19 = arith.addf %13, %18 : vector<128x128xf32>
    %c0_8 = arith.constant 0 : index
    %c2 = arith.constant 2 : index
    %20 = vector.load %arg3[%c0_8, %c2] : memref<128x8xf32, #tpu.memory_space<vmem>>, vector<128x1xf32>
    %21 = vector.extract_strided_slice %5 {offsets = [2, 0], sizes = [1, 128], strides = [1, 1]} : vector<8x128xf32> to vector<1x128xf32>
    %22 = vector.broadcast %20 : vector<128x1xf32> to vector<128x128xf32>
    %23 = vector.broadcast %21 : vector<1x128xf32> to vector<128x128xf32>
    %24 = arith.mulf %22, %23 : vector<128x128xf32>
    %25 = arith.addf %19, %24 : vector<128x128xf32>
    %cst = arith.constant 0.000000e+00 : f32
    %26 = vector.broadcast %cst : f32 to vector<128x128xf32>
    %27 = arith.maximumf %25, %26 : vector<128x128xf32>
    %28 = arith.truncf %27 : vector<128x128xf32> to vector<128x128xbf16>
    %c0_9 = arith.constant 0 : index
    %c0_10 = arith.constant 0 : index
    %c0_11 = arith.constant 0 : index
    %29 = vector.load %arg4[%c0_9, %c0_10, %c0_11] : memref<3x128x128xbf16, #tpu.memory_space<vmem>>, vector<1x128x128xbf16>
    %30 = vector.shape_cast %29 : vector<1x128x128xbf16> to vector<128x128xbf16>
    %cst_12 = arith.constant dense<0.000000e+00> : vector<128x128xf32>
    %31 = tpu.matmul %30, %28, %cst_12 {dimension_numbers = #tpu.dot_dimension_numbers<[1], [0], [0], [1], [0, 0, 1, 1], [], []>} : vector<128x128xbf16>, vector<128x128xbf16>, vector<128x128xf32> -> vector<128x128xf32>
    %c0_13 = arith.constant 0 : index
    %c1_14 = arith.constant 1 : index
    %32 = vector.load %arg5[%c0_13, %c1_14] : memref<128x8xf32, #tpu.memory_space<vmem>>, vector<128x1xf32>
    %33 = vector.broadcast %32 : vector<128x1xf32> to vector<128x128xf32>
    %34 = arith.addf %31, %33 : vector<128x128xf32>
    %cst_15 = arith.constant 0.000000e+00 : f32
    %35 = vector.broadcast %cst_15 : f32 to vector<128x128xf32>
    %36 = arith.maximumf %34, %35 : vector<128x128xf32>
    %37 = arith.truncf %36 : vector<128x128xf32> to vector<128x128xbf16>
    %c1_16 = arith.constant 1 : index
    %c0_17 = arith.constant 0 : index
    %c0_18 = arith.constant 0 : index
    %38 = vector.load %arg4[%c1_16, %c0_17, %c0_18] : memref<3x128x128xbf16, #tpu.memory_space<vmem>>, vector<1x128x128xbf16>
    %39 = vector.shape_cast %38 : vector<1x128x128xbf16> to vector<128x128xbf16>
    %cst_19 = arith.constant dense<0.000000e+00> : vector<128x128xf32>
    %40 = tpu.matmul %39, %37, %cst_19 {dimension_numbers = #tpu.dot_dimension_numbers<[1], [0], [0], [1], [0, 0, 1, 1], [], []>} : vector<128x128xbf16>, vector<128x128xbf16>, vector<128x128xf32> -> vector<128x128xf32>
    %c0_20 = arith.constant 0 : index
    %c2_21 = arith.constant 2 : index
    %41 = vector.load %arg5[%c0_20, %c2_21] : memref<128x8xf32, #tpu.memory_space<vmem>>, vector<128x1xf32>
    %42 = vector.broadcast %41 : vector<128x1xf32> to vector<128x128xf32>
    %43 = arith.addf %40, %42 : vector<128x128xf32>
    %cst_22 = arith.constant 0.000000e+00 : f32
    %44 = vector.broadcast %cst_22 : f32 to vector<128x128xf32>
    %45 = arith.maximumf %43, %44 : vector<128x128xf32>
    %46 = arith.truncf %45 : vector<128x128xf32> to vector<128x128xbf16>
    %c2_23 = arith.constant 2 : index
    %c0_24 = arith.constant 0 : index
    %c0_25 = arith.constant 0 : index
    %47 = vector.load %arg4[%c2_23, %c0_24, %c0_25] : memref<3x128x128xbf16, #tpu.memory_space<vmem>>, vector<1x128x128xbf16>
    %48 = vector.shape_cast %47 : vector<1x128x128xbf16> to vector<128x128xbf16>
    %cst_26 = arith.constant dense<0.000000e+00> : vector<128x128xf32>
    %49 = tpu.matmul %48, %46, %cst_26 {dimension_numbers = #tpu.dot_dimension_numbers<[1], [0], [0], [1], [0, 0, 1, 1], [], []>} : vector<128x128xbf16>, vector<128x128xbf16>, vector<128x128xf32> -> vector<128x128xf32>
    %c0_27 = arith.constant 0 : index
    %c3 = arith.constant 3 : index
    %50 = vector.load %arg5[%c0_27, %c3] : memref<128x8xf32, #tpu.memory_space<vmem>>, vector<128x1xf32>
    %51 = vector.broadcast %50 : vector<128x1xf32> to vector<128x128xf32>
    %52 = arith.addf %49, %51 : vector<128x128xf32>
    %cst_28 = arith.constant 0.000000e+00 : f32
    %53 = vector.broadcast %cst_28 : f32 to vector<128x128xf32>
    %54 = arith.maximumf %52, %53 : vector<128x128xf32>
    %55 = tpu.iota {dimensions = array<i32: 1>} : vector<1x128xi32>
    %c128_i32 = arith.constant 128 : i32
    %56 = arith.muli %arg1, %c128_i32 : i32
    %57 = vector.broadcast %56 : i32 to vector<1x128xi32>
    %58 = arith.addi %55, %57 : vector<1x128xi32>
    %c4_i32 = arith.constant 4 : i32
    %59 = vector.broadcast %c4_i32 : i32 to vector<1x128xi32>
    %60 = arith.cmpi slt, %58, %59 : vector<1x128xi32>
    %cst_29 = arith.constant 0.000000e+00 : f32
    %61 = vector.shape_cast %60 : vector<1x128xi1> to vector<1x128xi1>
    %62 = vector.broadcast %61 : vector<1x128xi1> to vector<128x128xi1>
    %63 = vector.broadcast %cst_29 : f32 to vector<128x128xf32>
    %64 = arith.select %62, %54, %63 : vector<128x128xi1>, vector<128x128xf32>
    %c0_30 = arith.constant 0 : index
    %c0_31 = arith.constant 0 : index
    %65 = vector.load %arg9[%c0_30, %c0_31] : memref<128x1xf32, #tpu.memory_space<vmem>>, vector<128x1xf32>
    %cst_32 = arith.constant dense<0.000000e+00> : vector<128xf32>
    %66 = vector.multi_reduction <add>, %64, %cst_32 [1] : vector<128x128xf32> to vector<128xf32>
    %67 = vector.shape_cast %66 : vector<128xf32> to vector<128x1xf32>
    %68 = arith.addf %65, %67 : vector<128x1xf32>
    %c0_33 = arith.constant 0 : index
    %c0_34 = arith.constant 0 : index
    %69 = vector.load %arg9[%c0_33, %c0_34] : memref<128x1xf32, #tpu.memory_space<vmem>>, vector<128x1xf32>
    tpu.vector_store %arg9[%c0_33, %c0_34], %68 {strides = array<i32>} : memref<128x1xf32, #tpu.memory_space<vmem>>, vector<128x1xf32>,
    %c0_i32_35 = arith.constant 0 : i32
    %70 = arith.cmpi eq, %arg1, %c0_i32_35 : i32
    %71 = arith.extui %70 : i1 to i32
    %c0_i32_36 = arith.constant 0 : i32
    %72 = arith.cmpi ne, %71, %c0_i32_36 : i32
    scf.if %72 {
      %c0_37 = arith.constant 0 : index
      %c0_38 = arith.constant 0 : index
      %73 = vector.load %arg9[%c0_37, %c0_38] : memref<128x1xf32, #tpu.memory_space<vmem>>, vector<128x1xf32>
      %cst_39 = arith.constant 2.500000e-01 : f32
      %74 = vector.broadcast %cst_39 : f32 to vector<128x1xf32>
      %75 = arith.mulf %73, %74 : vector<128x1xf32>
      %c0_40 = arith.constant 0 : index
      %c0_41 = arith.constant 0 : index
      %76 = vector.load %arg6[%c0_40, %c0_41] : memref<128x128xf32, #tpu.memory_space<vmem>>, vector<128x128xf32>
      %77 = vector.broadcast %75 : vector<128x1xf32> to vector<128x128xf32>
      %78 = arith.mulf %76, %77 : vector<128x128xf32>
      %cst_42 = arith.constant dense<0.000000e+00> : vector<128xf32>
      %79 = vector.multi_reduction <add>, %78, %cst_42 [0] : vector<128x128xf32> to vector<128xf32>
      %80 = vector.shape_cast %79 : vector<128xf32> to vector<1x128xf32>
      %c0_43 = arith.constant 0 : index
      %c0_44 = arith.constant 0 : index
      %81 = vector.load %arg7[%c0_43, %c0_44] : memref<1x128xf32, #tpu.memory_space<vmem>>, vector<1x128xf32>
      %82 = arith.addf %80, %81 : vector<1x128xf32>
      %c0_45 = arith.constant 0 : index
      %c0_46 = arith.constant 0 : index
      %c0_47 = arith.constant 0 : index
      %83 = vector.load %arg8[%c0_45, %c0_46, %c0_47] : memref<1x1x128xf32, #tpu.memory_space<vmem>>, vector<1x1x128xf32>
      %84 = vector.shape_cast %83 : vector<1x1x128xf32> to vector<1x128xf32>
      %85 = vector.shape_cast %82 : vector<1x128xf32> to vector<1x1x128xf32>
      tpu.vector_store %arg8[%c0_45, %c0_46, %c0_47], %85 {strides = array<i32>} : memref<1x1x128xf32, #tpu.memory_space<vmem>>, vector<1x1x128xf32>,
    } else {
    }
    return
  }
  func.func @transform_0(%arg0: i32, %arg1: i32) -> (i32, i32, i32) {
    %c0_i32 = arith.constant 0 : i32
    %c0_i32_0 = arith.constant 0 : i32
    return %arg0, %c0_i32, %arg1 : i32, i32, i32
  }
  func.func @transform_1(%arg0: i32, %arg1: i32) -> (i32, i32) {
    %c0_i32 = arith.constant 0 : i32
    %c0_i32_0 = arith.constant 0 : i32
    %c0_i32_1 = arith.constant 0 : i32
    return %c0_i32, %c0_i32_0 : i32, i32
  }
  func.func @transform_2(%arg0: i32, %arg1: i32) -> (i32, i32, i32) {
    %c0_i32 = arith.constant 0 : i32
    %c0_i32_0 = arith.constant 0 : i32
    %c0_i32_1 = arith.constant 0 : i32
    %c0_i32_2 = arith.constant 0 : i32
    return %c0_i32, %c0_i32_0, %c0_i32_1 : i32, i32, i32
  }
  func.func @transform_3(%arg0: i32, %arg1: i32) -> (i32, i32) {
    %c0_i32 = arith.constant 0 : i32
    %c0_i32_0 = arith.constant 0 : i32
    %c0_i32_1 = arith.constant 0 : i32
    return %c0_i32, %c0_i32_0 : i32, i32
  }
  func.func @transform_4(%arg0: i32, %arg1: i32) -> (i32, i32) {
    %c0_i32 = arith.constant 0 : i32
    %c0_i32_0 = arith.constant 0 : i32
    %c0_i32_1 = arith.constant 0 : i32
    return %c0_i32, %c0_i32_0 : i32, i32
  }
  func.func @transform_5(%arg0: i32, %arg1: i32) -> (i32, i32) {
    %c0_i32 = arith.constant 0 : i32
    %c0_i32_0 = arith.constant 0 : i32
    %c0_i32_1 = arith.constant 0 : i32
    return %c0_i32, %c0_i32_0 : i32, i32
  }
  func.func @transform_6(%arg0: i32, %arg1: i32) -> (i32, i32, i32) {
    %c0_i32 = arith.constant 0 : i32
    %c0_i32_0 = arith.constant 0 : i32
    %c0_i32_1 = arith.constant 0 : i32
    return %arg0, %c0_i32, %c0_i32_0 : i32, i32, i32
  }
}

</mosaic_0001>

<llo_original>
// kernel: sartorius_forward.1
$region0: #{sartorius_forward.1}
  #allocation0 [shape = 'u32[]', space=smem, size = 0x4, offset = 0x4, fixed_abs, tag = 'smem constant byte address 0x4 - core index']
  #allocation1 [shape = 'u32[144,128]{1,0:T(1,128)}', space=vmem, size = 0x12000, scoped, tag = 'internal scratch']
  #allocation2 [shape = 'f32[128,1]{1,0:T(8,128)}', space=vmem, size = 0x10000, scoped, tag = 'scratch operand']
  %s0 = inlined_call_operand.vmem [shape: bf16[2,8,128], index: 0, kind: input, shape index: {}]
  %s1 = inlined_call_operand.vmem [shape: f32[128,8], index: 1, kind: input, shape index: {}]
  %s2 = inlined_call_operand.vmem [shape: bf16[3,128,128], index: 2, kind: input, shape index: {}]
  %s3 = inlined_call_operand.vmem [shape: f32[128,8], index: 3, kind: input, shape index: {}]
  %s4 = inlined_call_operand.vmem [shape: f32[128,128], index: 4, kind: input, shape index: {}]
  %s5 = inlined_call_operand.vmem [shape: f32[1,128], index: 5, kind: input, shape index: {}]
  %s6 = inlined_call_operand.vmem [shape: f32[2,1,128], index: 6, kind: output, shape index: {}]
  %s7 = sld [smem:[#allocation0]]
  $region65: #{sartorius_forward.1} parent=0
    _
  %s9 = ssub.s32 1, %s7
  %s10 = scalar_select 0, %s9, %s7
  loop: start=0, step=1, limit=4
  $region2: #{sartorius_forward.1} parent=0 // loop_pre_header
    _
  $region3: #{sartorius_forward.1} parent=0 // loop_header
    %s12 = sphi 0, %s16
    %p13 = scmp.ge.s32.totalorder %s12, 4
    %s19 = sphi 0, %s31
    %s20 = sphi 0, %s27
    %s21 = sphi 0, %s19
    %s22 = sphi 0, %s20
    %s23 = sphi 0, %s21
    %s24 = sphi 0, %s22
    %s36 = sphi 0, %s38
    %s39 = sphi 0, %s36
    %s40 = sphi 0, %s39
    %s56 = sphi 0, %s40
    %s60 = sphi 0, %s60
    %s62 = sphi 0, %s60
    %s63 = sphi 0, %s62
    %s77 = sphi 0, %s63
    %s81 = sphi 0, %s81
    %s83 = sphi 0, %s81
    %s84 = sphi 0, %s83
    %s98 = sphi 0, %s84
    %s102 = sphi 0, %s102
    %s104 = sphi 0, %s102
    %s105 = sphi 0, %s104
    %s119 = sphi 0, %s105
    %s123 = sphi 0, %s123
    %s125 = sphi 0, %s123
    %s126 = sphi 0, %s125
    %s140 = sphi 0, %s126
    %s144 = sphi 0, %s144
    %s146 = sphi 0, %s144
    %s147 = sphi 0, %s146
    %s161 = sphi 0, %s147
    %s167 = sphi 0, %s169
    %s170 = sphi 0, %s167
    %s171 = sphi 0, %s170
    %s187 = sphi 0, %s171
  $region4: #{sartorius_forward.1} parent=0 // loop_header_branch
    %15 = sbr.rel (%p13) target = $region8
  $region5: #{sartorius_forward.1} parent=0 // loop_body
    %s17 = ssub.s32 %s12, 1
    %s18 = ssub.s32 %s12, 2
    %s25 = sadd.s32 1, %s20
    %p26 = scmp.ge.s32.totalorder %s25, 1
    %s27 = scalar_select %p26, 0, %s25
    %s28 = sadd.s32 1, %s19
    %s29 = scalar_select %p26, %s28, %s19
    %p30 = scmp.ge.s32.totalorder %s29, 2
    %s31 = scalar_select %p30, 0, %s29
    %s32 = ssub.s32 %s19, %s31
    %s33 = ssub.s32 %s20, %s27
    %s34 = sor.u32 %s32, %s33
    %p35 = scmp.eq.s32.totalorder %s34, 0
    %s37 = sadd.s32 %s36, 1
    %s38 = scalar_select %p35, %s36, %s37
    %p41 = pneg %p35
    %p42 = scmp.eq.s32.totalorder %s12, 1
    %p43 = por %p41, %p42
    %p44 = scmp.ne.s32.totalorder %s36, %s39
    %p45 = scmp.eq.s32.totalorder %s12, 0
    %p46 = por %p44, %p45
    %p47 = scmp.ne.s32.totalorder %s36, %s39
    %p48 = scmp.eq.s32.totalorder %s17, 1
    %p49 = por %p47, %p48
    %p50 = scmp.ne.s32.totalorder %s39, %s40
    %p51 = scmp.eq.s32.totalorder %s17, 0
    %p52 = por %p50, %p51
    %p53 = scmp.ne.s32.totalorder %s39, %s40
    %p54 = scmp.eq.s32.totalorder %s18, 1
    %p55 = por %p53, %p54
    %p57 = scmp.ne.s32.totalorder %s40, %s56
    %p58 = scmp.eq.s32.totalorder %s18, 0
    %p59 = por %p57, %p58
    %s61 = sadd.s32 %s60, 1
    %p64 = scmp.eq.s32.totalorder %s12, 1
    %p65 = scmp.ne.s32.totalorder %s60, %s62
    %p66 = scmp.eq.s32.totalorder %s12, 0
    %p67 = por %p65, %p66
    %p68 = scmp.ne.s32.totalorder %s60, %s62
    %p69 = scmp.eq.s32.totalorder %s17, 1
    %p70 = por %p68, %p69
    %p71 = scmp.ne.s32.totalorder %s62, %s63
    %p72 = scmp.eq.s32.totalorder %s17, 0
    %p73 = por %p71, %p72
    %p74 = scmp.ne.s32.totalorder %s62, %s63
    %p75 = scmp.eq.s32.totalorder %s18, 1
    %p76 = por %p74, %p75
    %p78 = scmp.ne.s32.totalorder %s63, %s77
    %p79 = scmp.eq.s32.totalorder %s18, 0
    %p80 = por %p78, %p79
    %s82 = sadd.s32 %s81, 1
    %p85 = scmp.eq.s32.totalorder %s12, 1
    %p86 = scmp.ne.s32.totalorder %s81, %s83
    %p87 = scmp.eq.s32.totalorder %s12, 0
    %p88 = por %p86, %p87
    %p89 = scmp.ne.s32.totalorder %s81, %s83
    %p90 = scmp.eq.s32.totalorder %s17, 1
    %p91 = por %p89, %p90
    %p92 = scmp.ne.s32.totalorder %s83, %s84
    %p93 = scmp.eq.s32.totalorder %s17, 0
    %p94 = por %p92, %p93
    %p95 = scmp.ne.s32.totalorder %s83, %s84
    %p96 = scmp.eq.s32.totalorder %s18, 1
    %p97 = por %p95, %p96
    %p99 = scmp.ne.s32.totalorder %s84, %s98
    %p100 = scmp.eq.s32.totalorder %s18, 0
    %p101 = por %p99, %p100
    %s103 = sadd.s32 %s102, 1
    %p106 = scmp.eq.s32.totalorder %s12, 1
    %p107 = scmp.ne.s32.totalorder %s102, %s104
    %p108 = scmp.eq.s32.totalorder %s12, 0
    %p109 = por %p107, %p108
    %p110 = scmp.ne.s32.totalorder %s102, %s104
    %p111 = scmp.eq.s32.totalorder %s17, 1
    %p112 = por %p110, %p111
    %p113 = scmp.ne.s32.totalorder %s104, %s105
    %p114 = scmp.eq.s32.totalorder %s17, 0
    %p115 = por %p113, %p114
    %p116 = scmp.ne.s32.totalorder %s104, %s105
    %p117 = scmp.eq.s32.totalorder %s18, 1
    %p118 = por %p116, %p117
    %p120 = scmp.ne.s32.totalorder %s105, %s119
    %p121 = scmp.eq.s32.totalorder %s18, 0
    %p122 = por %p120, %p121
    %s124 = sadd.s32 %s123, 1
    %p127 = scmp.eq.s32.totalorder %s12, 1
    %p128 = scmp.ne.s32.totalorder %s123, %s125
    %p129 = scmp.eq.s32.totalorder %s12, 0
    %p130 = por %p128, %p129
    %p131 = scmp.ne.s32.totalorder %s123, %s125
    %p132 = scmp.eq.s32.totalorder %s17, 1
    %p133 = por %p131, %p132
    %p134 = scmp.ne.s32.totalorder %s125, %s126
    %p135 = scmp.eq.s32.totalorder %s17, 0
    %p136 = por %p134, %p135
    %p137 = scmp.ne.s32.totalorder %s125, %s126
    %p138 = scmp.eq.s32.totalorder %s18, 1
    %p139 = por %p137, %p138
    %p141 = scmp.ne.s32.totalorder %s126, %s140
    %p142 = scmp.eq.s32.totalorder %s18, 0
    %p143 = por %p141, %p142
    %s145 = sadd.s32 %s144, 1
    %p148 = scmp.eq.s32.totalorder %s12, 1
    %p149 = scmp.ne.s32.totalorder %s144, %s146
    %p150 = scmp.eq.s32.totalorder %s12, 0
    %p151 = por %p149, %p150
    %p152 = scmp.ne.s32.totalorder %s144, %s146
    %p153 = scmp.eq.s32.totalorder %s17, 1
    %p154 = por %p152, %p153
    %p155 = scmp.ne.s32.totalorder %s146, %s147
    %p156 = scmp.eq.s32.totalorder %s17, 0
    %p157 = por %p155, %p156
    %p158 = scmp.ne.s32.totalorder %s146, %s147
    %p159 = scmp.eq.s32.totalorder %s18, 1
    %p160 = por %p158, %p159
    %p162 = scmp.ne.s32.totalorder %s147, %s161
    %p163 = scmp.eq.s32.totalorder %s18, 0
    %p164 = por %p162, %p163
    %s165 = ssub.s32 %s19, %s31
    %p166 = scmp.eq.s32.totalorder %s165, 0
    %s168 = sadd.s32 %s167, 1
    %s169 = scalar_select %p166, %s167, %s168
    %p172 = pneg %p166
    %p173 = scmp.eq.s32.totalorder %s12, 1
    %p174 = por %p172, %p173
    %p175 = scmp.ne.s32.totalorder %s167, %s170
    %p176 = scmp.eq.s32.totalorder %s12, 0
    %p177 = por %p175, %p176
    %p178 = scmp.ne.s32.totalorder %s167, %s170
    %p179 = scmp.eq.s32.totalorder %s17, 1
    %p180 = por %p178, %p179
    %p181 = scmp.ne.s32.totalorder %s170, %s171
    %p182 = scmp.eq.s32.totalorder %s17, 0
    %p183 = por %p181, %p182
    %p184 = scmp.ne.s32.totalorder %s170, %s171
    %p185 = scmp.eq.s32.totalorder %s18, 1
    %p186 = por %p184, %p185
    %p188 = scmp.ne.s32.totalorder %s171, %s187
    %p189 = scmp.eq.s32.totalorder %s18, 0
    %p190 = por %p188, %p189
    %p191 = scmp.le.s32.totalorder 1, %s12
    %p192 = scmp.lt.s32.totalorder %s12, 3
    %p193 = pnand %p191, %p192
    %p194 = pneg %p193
    // Predicated region
    $region9: #{sartorius_forward.1} parent=5 // pred_check
      _
    $region10: #{sartorius_forward.1} parent=5 // pred_check_branch
      %196 = sbr.rel (%p193) target = $region12
    $region11: #{sartorius_forward.1} parent=5 // pred_region
      %s197 = ssub.s32 %s12, 1
      // Predicated region
      $region13: #{sartorius_forward.1} parent=11 // pred_check
        %p198 = pneg %p73
      $region14: #{sartorius_forward.1} parent=11 // pred_check_branch
        %200 = sbr.rel (%p198) target = $region16
      $region15: #{sartorius_forward.1} parent=11 // pred_region
        _
      $region16: #{sartorius_forward.1} parent=11 // pred_fallthru
        _
      // Predicated region
      $region17: #{sartorius_forward.1} parent=11 // pred_check
        %p201 = pneg %p94
      $region18: #{sartorius_forward.1} parent=11 // pred_check_branch
        %203 = sbr.rel (%p201) target = $region20
      $region19: #{sartorius_forward.1} parent=11 // pred_region
        _
      $region20: #{sartorius_forward.1} parent=11 // pred_fallthru
        _
      // Predicated region
      $region21: #{sartorius_forward.1} parent=11 // pred_check
        %p204 = pneg %p115
      $region22: #{sartorius_forward.1} parent=11 // pred_check_branch
        %206 = sbr.rel (%p204) target = $region24
      $region23: #{sartorius_forward.1} parent=11 // pred_region
        _
      $region24: #{sartorius_forward.1} parent=11 // pred_fallthru
        _
      // Predicated region
      $region25: #{sartorius_forward.1} parent=11 // pred_check
        %p207 = pneg %p136
      $region26: #{sartorius_forward.1} parent=11 // pred_check_branch
        %209 = sbr.rel (%p207) target = $region28
      $region27: #{sartorius_forward.1} parent=11 // pred_region
        _
      $region28: #{sartorius_forward.1} parent=11 // pred_fallthru
        _
      // Predicated region
      $region29: #{sartorius_forward.1} parent=11 // pred_check
        %p210 = pneg %p157
      $region30: #{sartorius_forward.1} parent=11 // pred_check_branch
        %212 = sbr.rel (%p210) target = $region32
      $region31: #{sartorius_forward.1} parent=11 // pred_region
        _
      $region32: #{sartorius_forward.1} parent=11 // pred_fallthru
        _
    $region12: #{sartorius_forward.1} parent=5 // pred_fallthru
      _
    %p213 = scmp.lt.s32.totalorder %s12, 2
    // Predicated region
    $region33: #{sartorius_forward.1} parent=5 // pred_check
      %p214 = pneg %p213
    $region34: #{sartorius_forward.1} parent=5 // pred_check_branch
      %216 = sbr.rel (%p214) target = $region36
    $region35: #{sartorius_forward.1} parent=5 // pred_region
      // Predicated region
      $region37: #{sartorius_forward.1} parent=35 // pred_check
        %p217 = pneg %p46
      $region38: #{sartorius_forward.1} parent=35 // pred_check_branch
        %219 = sbr.rel (%p217) target = $region40
      $region39: #{sartorius_forward.1} parent=35 // pred_region
        %p220 = scmp.lt.s32.totalorder %s19, 1
        %s221 = scalar_select %p220, %s19, 1
        %p222 = scmp.lt.s32.totalorder %s20, 0
        %s223 = scalar_select %p222, %s20, 0
        %s224 = sadd.s32 %s223, %s221
        %s225 = smul.addr %s224, 4
        %s226 = scalar_lea.vmem %s0, %s225
      $region40: #{sartorius_forward.1} parent=35 // pred_fallthru
        _
    $region36: #{sartorius_forward.1} parent=5 // pred_fallthru
      _
    %p227 = scmp.le.s32.totalorder 1, %s12
    %p228 = scmp.lt.s32.totalorder %s12, 3
    %p229 = pnand %p227, %p228
    %p230 = pneg %p229
    // Predicated region
    $region41: #{sartorius_forward.1} parent=5 // pred_check
      _
    $region42: #{sartorius_forward.1} parent=5 // pred_check_branch
      %232 = sbr.rel (%p229) target = $region44
    $region43: #{sartorius_forward.1} parent=5 // pred_region
      %s233 = ssub.s32 %s12, 1
      %p234 = scmp.lt.s32.totalorder %s21, 1
      %s235 = scalar_select %p234, %s21, 1
      %p236 = scmp.lt.s32.totalorder %s22, 0
      %s237 = scalar_select %p236, %s22, 0
      %s238 = sadd.s32 %s237, %s235
      %s239 = smul.addr %s238, 4
      %s240 = scalar_lea.vmem %s0, %s239
      %p241 = pneg %p52
      %p242 = pneg %p49
      %p243 = pneg %p73
      %p244 = pneg %p70
      %p245 = pneg %p94
      %p246 = pneg %p91
      %p247 = pneg %p115
      %p248 = pneg %p112
      %p249 = pneg %p136
      %p250 = pneg %p133
      %p251 = pneg %p157
      %p252 = pneg %p154
      %p253 = pneg %p183
      %p254 = pneg %p180
      %p255 = scmp.lt.s32.totalorder %s21, 1
      %s256 = scalar_select %p255, %s21, 1
      %s257 = scalar_lea.vmem %s6, %s256
      %p258 = scmp.lt.s32.totalorder %s21, 1
      %s259 = scalar_select %p258, %s21, 1
      %p260 = scmp.lt.s32.totalorder %s22, 0
      %s261 = scalar_select %p260, %s22, 0
      %s262 = sadd.s32 %s261, %s259
      %s263 = smul.addr %s262, 4
      %s264 = scalar_lea.vmem %s0, %s263
      %p265 = scmp.lt.s32.totalorder %s21, 1
      %s266 = scalar_select %p265, %s21, 1
      %s267 = scalar_lea.vmem %s6, %s266
      %p269 = scmp.eq.s32.totalorder %s22, 0
      // Predicated region
      $region45: #{sartorius_forward.1} parent=43 // pred_check
        %p270 = pneg %p269
      $region46: #{sartorius_forward.1} parent=43 // pred_check_branch
        %272 = sbr.rel (%p270) target = $region48
      $region47: #{sartorius_forward.1} parent=43 // pred_region
        %vm273 = vcmask 7168
        %274 = vst.msk [vmem:[#allocation2] sm:$0xff] %vm273, 0.0
        %275 = vst.msk [vmem:[#allocation2 + $0x8] sm:$0xff] %vm273, 0.0
        %276 = vst.msk [vmem:[#allocation2 + $0x10] sm:$0xff] %vm273, 0.0
        %277 = vst.msk [vmem:[#allocation2 + $0x18] sm:$0xff] %vm273, 0.0
        %278 = vst.msk [vmem:[#allocation2 + $0x20] sm:$0xff] %vm273, 0.0
        %279 = vst.msk [vmem:[#allocation2 + $0x28] sm:$0xff] %vm273, 0.0
        %280 = vst.msk [vmem:[#allocation2 + $0x30] sm:$0xff] %vm273, 0.0
        %281 = vst.msk [vmem:[#allocation2 + $0x38] sm:$0xff] %vm273, 0.0
        %282 = vst.msk [vmem:[#allocation2 + $0x40] sm:$0xff] %vm273, 0.0
        %283 = vst.msk [vmem:[#allocation2 + $0x48] sm:$0xff] %vm273, 0.0
        %284 = vst.msk [vmem:[#allocation2 + $0x50] sm:$0xff] %vm273, 0.0
        %285 = vst.msk [vmem:[#allocation2 + $0x58] sm:$0xff] %vm273, 0.0
        %286 = vst.msk [vmem:[#allocation2 + $0x60] sm:$0xff] %vm273, 0.0
        %287 = vst.msk [vmem:[#allocation2 + $0x68] sm:$0xff] %vm273, 0.0
        %288 = vst.msk [vmem:[#allocation2 + $0x70] sm:$0xff] %vm273, 0.0
        %289 = vst.msk [vmem:[#allocation2 + $0x78] sm:$0xff] %vm273, 0.0
      $region48: #{sartorius_forward.1} parent=43 // pred_fallthru
        _
      %v290 = vld [vmem:[%s264] sm:$0xf]
      %v291 = vunpack.c.l.bf16 %v290
      %v292 = vld [vmem:[%s3] sm:$0xff]
      %v293 = vld [vmem:[%s3 + $0x8] sm:$0xff]
      %v294 = vld [vmem:[%s3 + $0x10] sm:$0xff]
      %v295 = vld [vmem:[%s3 + $0x18] sm:$0xff]
      %v296 = vld [vmem:[%s3 + $0x20] sm:$0xff]
      %v297 = vld [vmem:[%s3 + $0x28] sm:$0xff]
      %v298 = vld [vmem:[%s3 + $0x30] sm:$0xff]
      %v299 = vld [vmem:[%s3 + $0x38] sm:$0xff]
      %v300 = vld [vmem:[%s3 + $0x40] sm:$0xff]
      %v301 = vld [vmem:[%s3 + $0x48] sm:$0xff]
      %v302 = vld [vmem:[%s3 + $0x50] sm:$0xff]
      %v303 = vld [vmem:[%s3 + $0x58] sm:$0xff]
      %v304 = vld [vmem:[%s3 + $0x60] sm:$0xff]
      %v305 = vld [vmem:[%s3 + $0x68] sm:$0xff]
      %v306 = vld [vmem:[%s3 + $0x70] sm:$0xff]
      %v307 = vld [vmem:[%s3 + $0x78] sm:$0xff]
      %v308 = vld [vmem:[%s1] sm:$0xff]
      %v309 = vld [vmem:[%s1 + $0x8] sm:$0xff]
      %v310 = vld [vmem:[%s1 + $0x10] sm:$0xff]
      %v311 = vld [vmem:[%s1 + $0x18] sm:$0xff]
      %v312 = vld [vmem:[%s1 + $0x20] sm:$0xff]
      %v313 = vld [vmem:[%s1 + $0x28] sm:$0xff]
      %v314 = vld [vmem:[%s1 + $0x30] sm:$0xff]
      %v315 = vld [vmem:[%s1 + $0x38] sm:$0xff]
      %v316 = vld [vmem:[%s1 + $0x40] sm:$0xff]
      %v317 = vld [vmem:[%s1 + $0x48] sm:$0xff]
      %v318 = vld [vmem:[%s1 + $0x50] sm:$0xff]
      %v319 = vld [vmem:[%s1 + $0x58] sm:$0xff]
      %v320 = vld [vmem:[%s1 + $0x60] sm:$0xff]
      %v321 = vld [vmem:[%s1 + $0x68] sm:$0xff]
      %v322 = vld [vmem:[%s1 + $0x70] sm:$0xff]
      %v323 = vld [vmem:[%s1 + $0x78] sm:$0xff]
      %325 = vset.pattern.permute.xlu0 0
      %326 = vperm.xlu0 %325, %v308
      %v327 = vpop.permute.xlu0 %326
      %330 = vset.pattern.permute.xlu0 0
      %331 = vperm.xlu0 %330, %v309
      %v332 = vpop.permute.xlu0 %331
      %335 = vset.pattern.permute.xlu0 0
      %336 = vperm.xlu0 %335, %v310
      %v337 = vpop.permute.xlu0 %336
      %340 = vset.pattern.permute.xlu0 0
      %341 = vperm.xlu0 %340, %v311
      %v342 = vpop.permute.xlu0 %341
      %345 = vset.pattern.permute.xlu0 0
      %346 = vperm.xlu0 %345, %v312
      %v347 = vpop.permute.xlu0 %346
      %350 = vset.pattern.permute.xlu0 0
      %351 = vperm.xlu0 %350, %v313
      %v352 = vpop.permute.xlu0 %351
      %355 = vset.pattern.permute.xlu0 0
      %356 = vperm.xlu0 %355, %v314
      %v357 = vpop.permute.xlu0 %356
      %360 = vset.pattern.permute.xlu0 0
      %361 = vperm.xlu0 %360, %v315
      %v362 = vpop.permute.xlu0 %361
      %365 = vset.pattern.permute.xlu0 0
      %366 = vperm.xlu0 %365, %v316
      %v367 = vpop.permute.xlu0 %366
      %370 = vset.pattern.permute.xlu0 0
      %371 = vperm.xlu0 %370, %v317
      %v372 = vpop.permute.xlu0 %371
      %375 = vset.pattern.permute.xlu0 0
      %376 = vperm.xlu0 %375, %v318
      %v377 = vpop.permute.xlu0 %376
      %380 = vset.pattern.permute.xlu0 0
      %381 = vperm.xlu0 %380, %v319
      %v382 = vpop.permute.xlu0 %381
      %385 = vset.pattern.permute.xlu0 0
      %386 = vperm.xlu0 %385, %v320
      %v387 = vpop.permute.xlu0 %386
      %390 = vset.pattern.permute.xlu0 0
      %391 = vperm.xlu0 %390, %v321
      %v392 = vpop.permute.xlu0 %391
      %395 = vset.pattern.permute.xlu0 0
      %396 = vperm.xlu0 %395, %v322
      %v397 = vpop.permute.xlu0 %396
      %400 = vset.pattern.permute.xlu0 0
      %401 = vperm.xlu0 %400, %v323
      %v402 = vpop.permute.xlu0 %401
      %v404 = vlaneseq
      %v405 = vshrl.u32 %v404, 7
      %v406 = vsub.s32 0, %v405
      %v407 = vrot.slane %v291, %v406
      %v408 = vmul.f32 %v327, %v407
      %v409 = vmul.f32 %v332, %v407
      %v410 = vmul.f32 %v337, %v407
      %v411 = vmul.f32 %v342, %v407
      %v412 = vmul.f32 %v347, %v407
      %v413 = vmul.f32 %v352, %v407
      %v414 = vmul.f32 %v357, %v407
      %v415 = vmul.f32 %v362, %v407
      %v416 = vmul.f32 %v367, %v407
      %v417 = vmul.f32 %v372, %v407
      %v418 = vmul.f32 %v377, %v407
      %v419 = vmul.f32 %v382, %v407
      %v420 = vmul.f32 %v387, %v407
      %v421 = vmul.f32 %v392, %v407
      %v422 = vmul.f32 %v397, %v407
      %v423 = vmul.f32 %v402, %v407
      %425 = vset.pattern.permute.xlu0 0
      %426 = vperm.xlu0 %425, %v292
      %v427 = vpop.permute.xlu0 %426
      %430 = vset.pattern.permute.xlu0 0
      %431 = vperm.xlu0 %430, %v293
      %v432 = vpop.permute.xlu0 %431
      %435 = vset.pattern.permute.xlu0 0
      %436 = vperm.xlu0 %435, %v294
      %v437 = vpop.permute.xlu0 %436
      %440 = vset.pattern.permute.xlu0 0
      %441 = vperm.xlu0 %440, %v295
      %v442 = vpop.permute.xlu0 %441
      %445 = vset.pattern.permute.xlu0 0
      %446 = vperm.xlu0 %445, %v296
      %v447 = vpop.permute.xlu0 %446
      %450 = vset.pattern.permute.xlu0 0
      %451 = vperm.xlu0 %450, %v297
      %v452 = vpop.permute.xlu0 %451
      %455 = vset.pattern.permute.xlu0 0
      %456 = vperm.xlu0 %455, %v298
      %v457 = vpop.permute.xlu0 %456
      %460 = vset.pattern.permute.xlu0 0
      %461 = vperm.xlu0 %460, %v299
      %v462 = vpop.permute.xlu0 %461
      %465 = vset.pattern.permute.xlu0 0
      %466 = vperm.xlu0 %465, %v300
      %v467 = vpop.permute.xlu0 %466
      %470 = vset.pattern.permute.xlu0 0
      %471 = vperm.xlu0 %470, %v301
      %v472 = vpop.permute.xlu0 %471
      %475 = vset.pattern.permute.xlu0 0
      %476 = vperm.xlu0 %475, %v302
      %v477 = vpop.permute.xlu0 %476
      %480 = vset.pattern.permute.xlu0 0
      %481 = vperm.xlu0 %480, %v303
      %v482 = vpop.permute.xlu0 %481
      %485 = vset.pattern.permute.xlu0 0
      %486 = vperm.xlu0 %485, %v304
      %v487 = vpop.permute.xlu0 %486
      %490 = vset.pattern.permute.xlu0 0
      %491 = vperm.xlu0 %490, %v305
      %v492 = vpop.permute.xlu0 %491
      %495 = vset.pattern.permute.xlu0 0
      %496 = vperm.xlu0 %495, %v306
      %v497 = vpop.permute.xlu0 %496
      %500 = vset.pattern.permute.xlu0 0
      %501 = vperm.xlu0 %500, %v307
      %v502 = vpop.permute.xlu0 %501
      %v504 = vadd.f32 %v427, %v408
      %v505 = vadd.f32 %v432, %v409
      %v506 = vadd.f32 %v437, %v410
      %v507 = vadd.f32 %v442, %v411
      %v508 = vadd.f32 %v447, %v412
      %v509 = vadd.f32 %v452, %v413
      %v510 = vadd.f32 %v457, %v414
      %v511 = vadd.f32 %v462, %v415
      %v512 = vadd.f32 %v467, %v416
      %v513 = vadd.f32 %v472, %v417
      %v514 = vadd.f32 %v477, %v418
      %v515 = vadd.f32 %v482, %v419
      %v516 = vadd.f32 %v487, %v420
      %v517 = vadd.f32 %v492, %v421
      %v518 = vadd.f32 %v497, %v422
      %v519 = vadd.f32 %v502, %v423
      %520 = vset.pattern.permute.xlu0 1
      %521 = vperm.xlu0 %520, %v308
      %v522 = vpop.permute.xlu0 %521
      %524 = vset.pattern.permute.xlu0 1
      %525 = vperm.xlu0 %524, %v309
      %v526 = vpop.permute.xlu0 %525
      %528 = vset.pattern.permute.xlu0 1
      %529 = vperm.xlu0 %528, %v310
      %v530 = vpop.permute.xlu0 %529
      %532 = vset.pattern.permute.xlu0 1
      %533 = vperm.xlu0 %532, %v311
      %v534 = vpop.permute.xlu0 %533
      %536 = vset.pattern.permute.xlu0 1
      %537 = vperm.xlu0 %536, %v312
      %v538 = vpop.permute.xlu0 %537
      %540 = vset.pattern.permute.xlu0 1
      %541 = vperm.xlu0 %540, %v313
      %v542 = vpop.permute.xlu0 %541
      %544 = vset.pattern.permute.xlu0 1
      %545 = vperm.xlu0 %544, %v314
      %v546 = vpop.permute.xlu0 %545
      %548 = vset.pattern.permute.xlu0 1
      %549 = vperm.xlu0 %548, %v315
      %v550 = vpop.permute.xlu0 %549
      %552 = vset.pattern.permute.xlu0 1
      %553 = vperm.xlu0 %552, %v316
      %v554 = vpop.permute.xlu0 %553
      %556 = vset.pattern.permute.xlu0 1
      %557 = vperm.xlu0 %556, %v317
      %v558 = vpop.permute.xlu0 %557
      %560 = vset.pattern.permute.xlu0 1
      %561 = vperm.xlu0 %560, %v318
      %v562 = vpop.permute.xlu0 %561
      %564 = vset.pattern.permute.xlu0 1
      %565 = vperm.xlu0 %564, %v319
      %v566 = vpop.permute.xlu0 %565
      %568 = vset.pattern.permute.xlu0 1
      %569 = vperm.xlu0 %568, %v320
      %v570 = vpop.permute.xlu0 %569
      %572 = vset.pattern.permute.xlu0 1
      %573 = vperm.xlu0 %572, %v321
      %v574 = vpop.permute.xlu0 %573
      %576 = vset.pattern.permute.xlu0 1
      %577 = vperm.xlu0 %576, %v322
      %v578 = vpop.permute.xlu0 %577
      %580 = vset.pattern.permute.xlu0 1
      %581 = vperm.xlu0 %580, %v323
      %v582 = vpop.permute.xlu0 %581
      %v584 = vlaneseq
      %v585 = vshrl.u32 %v584, 7
      %v586 = vsub.s32 1, %v585
      %v587 = vrot.slane %v291, %v586
      %v588 = vmul.f32 %v522, %v587
      %v589 = vmul.f32 %v526, %v587
      %v590 = vmul.f32 %v530, %v587
      %v591 = vmul.f32 %v534, %v587
      %v592 = vmul.f32 %v538, %v587
      %v593 = vmul.f32 %v542, %v587
      %v594 = vmul.f32 %v546, %v587
      %v595 = vmul.f32 %v550, %v587
      %v596 = vmul.f32 %v554, %v587
      %v597 = vmul.f32 %v558, %v587
      %v598 = vmul.f32 %v562, %v587
      %v599 = vmul.f32 %v566, %v587
      %v600 = vmul.f32 %v570, %v587
      %v601 = vmul.f32 %v574, %v587
      %v602 = vmul.f32 %v578, %v587
      %v603 = vmul.f32 %v582, %v587
      %v604 = vadd.f32 %v504, %v588
      %v605 = vadd.f32 %v505, %v589
      %v606 = vadd.f32 %v506, %v590
      %v607 = vadd.f32 %v507, %v591
      %v608 = vadd.f32 %v508, %v592
      %v609 = vadd.f32 %v509, %v593
      %v610 = vadd.f32 %v510, %v594
      %v611 = vadd.f32 %v511, %v595
      %v612 = vadd.f32 %v512, %v596
      %v613 = vadd.f32 %v513, %v597
      %v614 = vadd.f32 %v514, %v598
      %v615 = vadd.f32 %v515, %v599
      %v616 = vadd.f32 %v516, %v600
      %v617 = vadd.f32 %v517, %v601
      %v618 = vadd.f32 %v518, %v602
      %v619 = vadd.f32 %v519, %v603
      %620 = vset.pattern.permute.xlu0 2
      %621 = vperm.xlu0 %620, %v308
      %v622 = vpop.permute.xlu0 %621
      %624 = vset.pattern.permute.xlu0 2
      %625 = vperm.xlu0 %624, %v309
      %v626 = vpop.permute.xlu0 %625
      %628 = vset.pattern.permute.xlu0 2
      %629 = vperm.xlu0 %628, %v310
      %v630 = vpop.permute.xlu0 %629
      %632 = vset.pattern.permute.xlu0 2
      %633 = vperm.xlu0 %632, %v311
      %v634 = vpop.permute.xlu0 %633
      %636 = vset.pattern.permute.xlu0 2
      %637 = vperm.xlu0 %636, %v312
      %v638 = vpop.permute.xlu0 %637
      %640 = vset.pattern.permute.xlu0 2
      %641 = vperm.xlu0 %640, %v313
      %v642 = vpop.permute.xlu0 %641
      %644 = vset.pattern.permute.xlu0 2
      %645 = vperm.xlu0 %644, %v314
      %v646 = vpop.permute.xlu0 %645
      %648 = vset.pattern.permute.xlu0 2
      %649 = vperm.xlu0 %648, %v315
      %v650 = vpop.permute.xlu0 %649
      %652 = vset.pattern.permute.xlu0 2
      %653 = vperm.xlu0 %652, %v316
      %v654 = vpop.permute.xlu0 %653
      %656 = vset.pattern.permute.xlu0 2
      %657 = vperm.xlu0 %656, %v317
      %v658 = vpop.permute.xlu0 %657
      %660 = vset.pattern.permute.xlu0 2
      %661 = vperm.xlu0 %660, %v318
      %v662 = vpop.permute.xlu0 %661
      %664 = vset.pattern.permute.xlu0 2
      %665 = vperm.xlu0 %664, %v319
      %v666 = vpop.permute.xlu0 %665
      %668 = vset.pattern.permute.xlu0 2
      %669 = vperm.xlu0 %668, %v320
      %v670 = vpop.permute.xlu0 %669
      %672 = vset.pattern.permute.xlu0 2
      %673 = vperm.xlu0 %672, %v321
      %v674 = vpop.permute.xlu0 %673
      %676 = vset.pattern.permute.xlu0 2
      %677 = vperm.xlu0 %676, %v322
      %v678 = vpop.permute.xlu0 %677
      %680 = vset.pattern.permute.xlu0 2
      %681 = vperm.xlu0 %680, %v323
      %v682 = vpop.permute.xlu0 %681
      %v684 = vlaneseq
      %v685 = vshrl.u32 %v684, 7
      %v686 = vsub.s32 2, %v685
      %v687 = vrot.slane %v291, %v686
      %v688 = vmul.f32 %v622, %v687
      %v689 = vmul.f32 %v626, %v687
      %v690 = vmul.f32 %v630, %v687
      %v691 = vmul.f32 %v634, %v687
      %v692 = vmul.f32 %v638, %v687
      %v693 = vmul.f32 %v642, %v687
      %v694 = vmul.f32 %v646, %v687
      %v695 = vmul.f32 %v650, %v687
      %v696 = vmul.f32 %v654, %v687
      %v697 = vmul.f32 %v658, %v687
      %v698 = vmul.f32 %v662, %v687
      %v699 = vmul.f32 %v666, %v687
      %v700 = vmul.f32 %v670, %v687
      %v701 = vmul.f32 %v674, %v687
      %v702 = vmul.f32 %v678, %v687
      %v703 = vmul.f32 %v682, %v687
      %v704 = vadd.f32 %v604, %v688
      %v705 = vadd.f32 %v605, %v689
      %v706 = vadd.f32 %v606, %v690
      %v707 = vadd.f32 %v607, %v691
      %v708 = vadd.f32 %v608, %v692
      %v709 = vadd.f32 %v609, %v693
      %v710 = vadd.f32 %v610, %v694
      %v711 = vadd.f32 %v611, %v695
      %v712 = vadd.f32 %v612, %v696
      %v713 = vadd.f32 %v613, %v697
      %v714 = vadd.f32 %v614, %v698
      %v715 = vadd.f32 %v615, %v699
      %v716 = vadd.f32 %v616, %v700
      %v717 = vadd.f32 %v617, %v701
      %v718 = vadd.f32 %v618, %v702
      %v719 = vadd.f32 %v619, %v703
      %v720 = vmax.f32 %v704, 0.0
      %v721 = vmax.f32 %v705, 0.0
      %v722 = vmax.f32 %v706, 0.0
      %v723 = vmax.f32 %v707, 0.0
      %v724 = vmax.f32 %v708, 0.0
      %v725 = vmax.f32 %v709, 0.0
      %v726 = vmax.f32 %v710, 0.0
      %v727 = vmax.f32 %v711, 0.0
      %v728 = vmax.f32 %v712, 0.0
      %v729 = vmax.f32 %v713, 0.0
      %v730 = vmax.f32 %v714, 0.0
      %v731 = vmax.f32 %v715, 0.0
      %v732 = vmax.f32 %v716, 0.0
      %v733 = vmax.f32 %v717, 0.0
      %v734 = vmax.f32 %v718, 0.0
      %v735 = vmax.f32 %v719, 0.0
      %v736 = vpack.c.bf16 %v721, %v720
      %v737 = vpack.c.bf16 %v723, %v722
      %v738 = vpack.c.bf16 %v725, %v724
      %v739 = vpack.c.bf16 %v727, %v726
      %v740 = vpack.c.bf16 %v729, %v728
      %v741 = vpack.c.bf16 %v731, %v730
      %v742 = vpack.c.bf16 %v733, %v732
      %v743 = vpack.c.bf16 %v735, %v734
      %v744 = vld [vmem:[%s2] sm:$0xf]
      %v745 = vld [vmem:[%s2 + $0x4] sm:$0xf]
      %v746 = vld [vmem:[%s2 + $0x8] sm:$0xf]
      %v747 = vld [vmem:[%s2 + $0xc] sm:$0xf]
      %v748 = vld [vmem:[%s2 + $0x10] sm:$0xf]
      %v749 = vld [vmem:[%s2 + $0x14] sm:$0xf]
      %v750 = vld [vmem:[%s2 + $0x18] sm:$0xf]
      %v751 = vld [vmem:[%s2 + $0x1c] sm:$0xf]
      %v752 = vld [vmem:[%s2 + $0x20] sm:$0xf]
      %v753 = vld [vmem:[%s2 + $0x24] sm:$0xf]
      %v754 = vld [vmem:[%s2 + $0x28] sm:$0xf]
      %v755 = vld [vmem:[%s2 + $0x2c] sm:$0xf]
      %v756 = vld [vmem:[%s2 + $0x30] sm:$0xf]
      %v757 = vld [vmem:[%s2 + $0x34] sm:$0xf]
      %v758 = vld [vmem:[%s2 + $0x38] sm:$0xf]
      %v759 = vld [vmem:[%s2 + $0x3c] sm:$0xf]
      %760 = vset.pattern.permute.xlu0 1
      %761 = vperm.xlu0 %760, %v292
      %v762 = vpop.permute.xlu0 %761
      %764 = vset.pattern.permute.xlu0 1
      %765 = vperm.xlu0 %764, %v293
      %v766 = vpop.permute.xlu0 %765
      %768 = vset.pattern.permute.xlu0 1
      %769 = vperm.xlu0 %768, %v294
      %v770 = vpop.permute.xlu0 %769
      %772 = vset.pattern.permute.xlu0 1
      %773 = vperm.xlu0 %772, %v295
      %v774 = vpop.permute.xlu0 %773
      %776 = vset.pattern.permute.xlu0 1
      %777 = vperm.xlu0 %776, %v296
      %v778 = vpop.permute.xlu0 %777
      %780 = vset.pattern.permute.xlu0 1
      %781 = vperm.xlu0 %780, %v297
      %v782 = vpop.permute.xlu0 %781
      %784 = vset.pattern.permute.xlu0 1
      %785 = vperm.xlu0 %784, %v298
      %v786 = vpop.permute.xlu0 %785
      %788 = vset.pattern.permute.xlu0 1
      %789 = vperm.xlu0 %788, %v299
      %v790 = vpop.permute.xlu0 %789
      %792 = vset.pattern.permute.xlu0 1
      %793 = vperm.xlu0 %792, %v300
      %v794 = vpop.permute.xlu0 %793
      %796 = vset.pattern.permute.xlu0 1
      %797 = vperm.xlu0 %796, %v301
      %v798 = vpop.permute.xlu0 %797
      %800 = vset.pattern.permute.xlu0 1
      %801 = vperm.xlu0 %800, %v302
      %v802 = vpop.permute.xlu0 %801
      %804 = vset.pattern.permute.xlu0 1
      %805 = vperm.xlu0 %804, %v303
      %v806 = vpop.permute.xlu0 %805
      %808 = vset.pattern.permute.xlu0 1
      %809 = vperm.xlu0 %808, %v304
      %v810 = vpop.permute.xlu0 %809
      %812 = vset.pattern.permute.xlu0 1
      %813 = vperm.xlu0 %812, %v305
      %v814 = vpop.permute.xlu0 %813
      %816 = vset.pattern.permute.xlu0 1
      %817 = vperm.xlu0 %816, %v306
      %v818 = vpop.permute.xlu0 %817
      %820 = vset.pattern.permute.xlu0 1
      %821 = vperm.xlu0 %820, %v307
      %v822 = vpop.permute.xlu0 %821
      %v840 = vunpack.c.l.b16 %v744
      %v841 = vunpack.c.l.b16 %v745
      %v842 = vunpack.c.l.b16 %v746
      %v843 = vunpack.c.l.b16 %v747
      %v844 = vunpack.c.l.b16 %v748
      %v845 = vunpack.c.l.b16 %v749
      %v846 = vunpack.c.l.b16 %v750
      %v847 = vunpack.c.l.b16 %v751
      %v848 = vunpack.c.l.b16 %v752
      %v849 = vunpack.c.l.b16 %v753
      %v850 = vunpack.c.l.b16 %v754
      %v851 = vunpack.c.l.b16 %v755
      %v852 = vunpack.c.l.b16 %v756
      %v853 = vunpack.c.l.b16 %v757
      %v854 = vunpack.c.l.b16 %v758
      %v855 = vunpack.c.l.b16 %v759
      %v856 = vpack.c.b16 %v841, %v840
      %v857 = vpack.c.b16 %v843, %v842
      %v858 = vpack.c.b16 %v845, %v844
      %v859 = vpack.c.b16 %v847, %v846
      %v860 = vpack.c.b16 %v849, %v848
      %v861 = vpack.c.b16 %v851, %v850
      %v862 = vpack.c.b16 %v853, %v852
      %v863 = vpack.c.b16 %v855, %v854
      %872 = vmatprep.subr.bf16.mxu0 0
      %873 = vmatpush1.bf16.msra.mxu0 %v743
      %874 = vmatprep.subr.bf16.mxu0 0
      %875 = vmatpush1.bf16.msra.mxu0 %v742
      %876 = vmatprep.subr.bf16.mxu0 0
      %877 = vmatpush1.bf16.msra.mxu0 %v741
      %878 = vmatprep.subr.bf16.mxu0 0
      %879 = vmatpush1.bf16.msra.mxu0 %v740
      %880 = vmatprep.subr.bf16.mxu0 0
      %881 = vmatpush1.bf16.msra.mxu0 %v739
      %882 = vmatprep.subr.bf16.mxu0 0
      %883 = vmatpush1.bf16.msra.mxu0 %v738
      %884 = vmatprep.subr.bf16.mxu0 0
      %885 = vmatpush1.bf16.msra.mxu0 %v737
      %886 = vmatprep.subr.bf16.mxu0 0
      %887 = vmatpush1.bf16.msra.mxu0 %v736
      %888 = vmatprep.subr.bf16.mxu0 0
      %889 = vmatpush2.bf16.msra.mxu0 0
      %890 = vmatprep.subr.bf16.mxu0 0
      %891 = vmatpush2.bf16.msra.mxu0 0
      %892 = vmatprep.subr.bf16.mxu0 0
      %893 = vmatpush2.bf16.msra.mxu0 0
      %894 = vmatprep.subr.bf16.mxu0 0
      %895 = vmatpush2.bf16.msra.mxu0 0
      %896 = vmatprep.subr.bf16.mxu0 0
      %897 = vmatpush2.bf16.msra.mxu0 0
      %898 = vmatprep.subr.bf16.mxu0 0
      %899 = vmatpush2.bf16.msra.mxu0 0
      %900 = vmatprep.subr.bf16.mxu0 0
      %901 = vmatpush2.bf16.msra.mxu0 0
      %902 = vmatprep.subr.bf16.mxu0 0
      %903 = vmatpush2.bf16.msra.mxu0 0
      %904 = vmatprep.mubr.bf16.mxu0 0
      %905 = vmatmul.mubr.bf16.gmra.mxu0 %v856
      %v906 = vpop.f32.mrf.mxu0
      %v907 = vadd.f32 %v762, %v906
      %v908 = vpop.f32.mrf.mxu0
      %v909 = vpop.f32.mrf.mxu0
      %v910 = vadd.f32 %v766, %v909
      %v911 = vpop.f32.mrf.mxu0
      %912 = vmatprep.mubr.bf16.mxu0 0
      %913 = vmatmul.mubr.bf16.gmra.mxu0 %v857
      %v914 = vpop.f32.mrf.mxu0
      %v915 = vadd.f32 %v770, %v914
      %v916 = vpop.f32.mrf.mxu0
      %v917 = vpop.f32.mrf.mxu0
      %v918 = vadd.f32 %v774, %v917
      %v919 = vpop.f32.mrf.mxu0
      %920 = vmatprep.mubr.bf16.mxu0 0
      %921 = vmatmul.mubr.bf16.gmra.mxu0 %v858
      %v922 = vpop.f32.mrf.mxu0
      %v923 = vadd.f32 %v778, %v922
      %v924 = vpop.f32.mrf.mxu0
      %v925 = vpop.f32.mrf.mxu0
      %v926 = vadd.f32 %v782, %v925
      %v927 = vpop.f32.mrf.mxu0
      %928 = vmatprep.mubr.bf16.mxu0 0
      %929 = vmatmul.mubr.bf16.gmra.mxu0 %v859
      %v930 = vpop.f32.mrf.mxu0
      %v931 = vadd.f32 %v786, %v930
      %v932 = vpop.f32.mrf.mxu0
      %v933 = vpop.f32.mrf.mxu0
      %v934 = vadd.f32 %v790, %v933
      %v935 = vpop.f32.mrf.mxu0
      %936 = vmatprep.mubr.bf16.mxu0 0
      %937 = vmatmul.mubr.bf16.gmra.mxu0 %v860
      %v938 = vpop.f32.mrf.mxu0
      %v939 = vadd.f32 %v794, %v938
      %v940 = vpop.f32.mrf.mxu0
      %v941 = vpop.f32.mrf.mxu0
      %v942 = vadd.f32 %v798, %v941
      %v943 = vpop.f32.mrf.mxu0
      %944 = vmatprep.mubr.bf16.mxu0 0
      %945 = vmatmul.mubr.bf16.gmra.mxu0 %v861
      %v946 = vpop.f32.mrf.mxu0
      %v947 = vadd.f32 %v802, %v946
      %v948 = vpop.f32.mrf.mxu0
      %v949 = vpop.f32.mrf.mxu0
      %v950 = vadd.f32 %v806, %v949
      %v951 = vpop.f32.mrf.mxu0
      %952 = vmatprep.mubr.bf16.mxu0 0
      %953 = vmatmul.mubr.bf16.gmra.mxu0 %v862
      %v954 = vpop.f32.mrf.mxu0
      %v955 = vadd.f32 %v810, %v954
      %v956 = vpop.f32.mrf.mxu0
      %v957 = vpop.f32.mrf.mxu0
      %v958 = vadd.f32 %v814, %v957
      %v959 = vpop.f32.mrf.mxu0
      %960 = vmatprep.mubr.bf16.mxu0 0
      %961 = vmatmul.mubr.bf16.gmra.mxu0 %v863
      %v962 = vpop.f32.mrf.mxu0
      %v963 = vadd.f32 %v818, %v962
      %v964 = vpop.f32.mrf.mxu0
      %v965 = vpop.f32.mrf.mxu0
      %v966 = vadd.f32 %v822, %v965
      %v967 = vpop.f32.mrf.mxu0
      %968 = vdwg.mxu0
      %v969 = vmax.f32 %v907, 0.0
      %v970 = vmax.f32 %v910, 0.0
      %v971 = vmax.f32 %v915, 0.0
      %v972 = vmax.f32 %v918, 0.0
      %v973 = vmax.f32 %v923, 0.0
      %v974 = vmax.f32 %v926, 0.0
      %v975 = vmax.f32 %v931, 0.0
      %v976 = vmax.f32 %v934, 0.0
      %v977 = vmax.f32 %v939, 0.0
      %v978 = vmax.f32 %v942, 0.0
      %v979 = vmax.f32 %v947, 0.0
      %v980 = vmax.f32 %v950, 0.0
      %v981 = vmax.f32 %v955, 0.0
      %v982 = vmax.f32 %v958, 0.0
      %v983 = vmax.f32 %v963, 0.0
      %v984 = vmax.f32 %v966, 0.0
      %v985 = vpack.c.bf16 %v970, %v969
      %v986 = vpack.c.bf16 %v972, %v971
      %v987 = vpack.c.bf16 %v974, %v973
      %v988 = vpack.c.bf16 %v976, %v975
      %v989 = vpack.c.bf16 %v978, %v977
      %v990 = vpack.c.bf16 %v980, %v979
      %v991 = vpack.c.bf16 %v982, %v981
      %v992 = vpack.c.bf16 %v984, %v983
      %s993 = scalar_lea.vmem %s2, 64
      %v994 = vld [vmem:[%s993] sm:$0xf]
      %v995 = vld [vmem:[%s993 + $0x4] sm:$0xf]
      %v996 = vld [vmem:[%s993 + $0x8] sm:$0xf]
      %v997 = vld [vmem:[%s993 + $0xc] sm:$0xf]
      %v998 = vld [vmem:[%s993 + $0x10] sm:$0xf]
      %v999 = vld [vmem:[%s993 + $0x14] sm:$0xf]
      %v1000 = vld [vmem:[%s993 + $0x18] sm:$0xf]
      %v1001 = vld [vmem:[%s993 + $0x1c] sm:$0xf]
      %v1002 = vld [vmem:[%s993 + $0x20] sm:$0xf]
      %v1003 = vld [vmem:[%s993 + $0x24] sm:$0xf]
      %v1004 = vld [vmem:[%s993 + $0x28] sm:$0xf]
      %v1005 = vld [vmem:[%s993 + $0x2c] sm:$0xf]
      %v1006 = vld [vmem:[%s993 + $0x30] sm:$0xf]
      %v1007 = vld [vmem:[%s993 + $0x34] sm:$0xf]
      %v1008 = vld [vmem:[%s993 + $0x38] sm:$0xf]
      %v1009 = vld [vmem:[%s993 + $0x3c] sm:$0xf]
      %1010 = vset.pattern.permute.xlu0 2
      %1011 = vperm.xlu0 %1010, %v292
      %v1012 = vpop.permute.xlu0 %1011
      %1014 = vset.pattern.permute.xlu0 2
      %1015 = vperm.xlu0 %1014, %v293
      %v1016 = vpop.permute.xlu0 %1015
      %1018 = vset.pattern.permute.xlu0 2
      %1019 = vperm.xlu0 %1018, %v294
      %v1020 = vpop.permute.xlu0 %1019
      %1022 = vset.pattern.permute.xlu0 2
      %1023 = vperm.xlu0 %1022, %v295
      %v1024 = vpop.permute.xlu0 %1023
      %1026 = vset.pattern.permute.xlu0 2
      %1027 = vperm.xlu0 %1026, %v296
      %v1028 = vpop.permute.xlu0 %1027
      %1030 = vset.pattern.permute.xlu0 2
      %1031 = vperm.xlu0 %1030, %v297
      %v1032 = vpop.permute.xlu0 %1031
      %1034 = vset.pattern.permute.xlu0 2
      %1035 = vperm.xlu0 %1034, %v298
      %v1036 = vpop.permute.xlu0 %1035
      %1038 = vset.pattern.permute.xlu0 2
      %1039 = vperm.xlu0 %1038, %v299
      %v1040 = vpop.permute.xlu0 %1039
      %1042 = vset.pattern.permute.xlu0 2
      %1043 = vperm.xlu0 %1042, %v300
      %v1044 = vpop.permute.xlu0 %1043
      %1046 = vset.pattern.permute.xlu0 2
      %1047 = vperm.xlu0 %1046, %v301
      %v1048 = vpop.permute.xlu0 %1047
      %1050 = vset.pattern.permute.xlu0 2
      %1051 = vperm.xlu0 %1050, %v302
      %v1052 = vpop.permute.xlu0 %1051
      %1054 = vset.pattern.permute.xlu0 2
      %1055 = vperm.xlu0 %1054, %v303
      %v1056 = vpop.permute.xlu0 %1055
      %1058 = vset.pattern.permute.xlu0 2
      %1059 = vperm.xlu0 %1058, %v304
      %v1060 = vpop.permute.xlu0 %1059
      %1062 = vset.pattern.permute.xlu0 2
      %1063 = vperm.xlu0 %1062, %v305
      %v1064 = vpop.permute.xlu0 %1063
      %1066 = vset.pattern.permute.xlu0 2
      %1067 = vperm.xlu0 %1066, %v306
      %v1068 = vpop.permute.xlu0 %1067
      %1070 = vset.pattern.permute.xlu0 2
      %1071 = vperm.xlu0 %1070, %v307
      %v1072 = vpop.permute.xlu0 %1071
      %v1090 = vunpack.c.l.b16 %v994
      %v1091 = vunpack.c.l.b16 %v995
      %v1092 = vunpack.c.l.b16 %v996
      %v1093 = vunpack.c.l.b16 %v997
      %v1094 = vunpack.c.l.b16 %v998
      %v1095 = vunpack.c.l.b16 %v999
      %v1096 = vunpack.c.l.b16 %v1000
      %v1097 = vunpack.c.l.b16 %v1001
      %v1098 = vunpack.c.l.b16 %v1002
      %v1099 = vunpack.c.l.b16 %v1003
      %v1100 = vunpack.c.l.b16 %v1004
      %v1101 = vunpack.c.l.b16 %v1005
      %v1102 = vunpack.c.l.b16 %v1006
      %v1103 = vunpack.c.l.b16 %v1007
      %v1104 = vunpack.c.l.b16 %v1008
      %v1105 = vunpack.c.l.b16 %v1009
      %v1106 = vpack.c.b16 %v1091, %v1090
      %v1107 = vpack.c.b16 %v1093, %v1092
      %v1108 = vpack.c.b16 %v1095, %v1094
      %v1109 = vpack.c.b16 %v1097, %v1096
      %v1110 = vpack.c.b16 %v1099, %v1098
      %v1111 = vpack.c.b16 %v1101, %v1100
      %v1112 = vpack.c.b16 %v1103, %v1102
      %v1113 = vpack.c.b16 %v1105, %v1104
      %1122 = vmatprep.subr.bf16.mxu0 0
      %1123 = vmatpush1.bf16.msra.mxu0 %v992
      %1124 = vmatprep.subr.bf16.mxu0 0
      %1125 = vmatpush1.bf16.msra.mxu0 %v991
      %1126 = vmatprep.subr.bf16.mxu0 0
      %1127 = vmatpush1.bf16.msra.mxu0 %v990
      %1128 = vmatprep.subr.bf16.mxu0 0
      %1129 = vmatpush1.bf16.msra.mxu0 %v989
      %1130 = vmatprep.subr.bf16.mxu0 0
      %1131 = vmatpush1.bf16.msra.mxu0 %v988
      %1132 = vmatprep.subr.bf16.mxu0 0
      %1133 = vmatpush1.bf16.msra.mxu0 %v987
      %1134 = vmatprep.subr.bf16.mxu0 0
      %1135 = vmatpush1.bf16.msra.mxu0 %v986
      %1136 = vmatprep.subr.bf16.mxu0 0
      %1137 = vmatpush1.bf16.msra.mxu0 %v985
      %1138 = vmatprep.subr.bf16.mxu0 0
      %1139 = vmatpush2.bf16.msra.mxu0 0
      %1140 = vmatprep.subr.bf16.mxu0 0
      %1141 = vmatpush2.bf16.msra.mxu0 0
      %1142 = vmatprep.subr.bf16.mxu0 0
      %1143 = vmatpush2.bf16.msra.mxu0 0
      %1144 = vmatprep.subr.bf16.mxu0 0
      %1145 = vmatpush2.bf16.msra.mxu0 0
      %1146 = vmatprep.subr.bf16.mxu0 0
      %1147 = vmatpush2.bf16.msra.mxu0 0
      %1148 = vmatprep.subr.bf16.mxu0 0
      %1149 = vmatpush2.bf16.msra.mxu0 0
      %1150 = vmatprep.subr.bf16.mxu0 0
      %1151 = vmatpush2.bf16.msra.mxu0 0
      %1152 = vmatprep.subr.bf16.mxu0 0
      %1153 = vmatpush2.bf16.msra.mxu0 0
      %1154 = vmatprep.mubr.bf16.mxu0 0
      %1155 = vmatmul.mubr.bf16.gmra.mxu0 %v1106
      %v1156 = vpop.f32.mrf.mxu0
      %v1157 = vadd.f32 %v1012, %v1156
      %v1158 = vpop.f32.mrf.mxu0
      %v1159 = vpop.f32.mrf.mxu0
      %v1160 = vadd.f32 %v1016, %v1159
      %v1161 = vpop.f32.mrf.mxu0
      %1162 = vmatprep.mubr.bf16.mxu0 0
      %1163 = vmatmul.mubr.bf16.gmra.mxu0 %v1107
      %v1164 = vpop.f32.mrf.mxu0
      %v1165 = vadd.f32 %v1020, %v1164
      %v1166 = vpop.f32.mrf.mxu0
      %v1167 = vpop.f32.mrf.mxu0
      %v1168 = vadd.f32 %v1024, %v1167
      %v1169 = vpop.f32.mrf.mxu0
      %1170 = vmatprep.mubr.bf16.mxu0 0
      %1171 = vmatmul.mubr.bf16.gmra.mxu0 %v1108
      %v1172 = vpop.f32.mrf.mxu0
      %v1173 = vadd.f32 %v1028, %v1172
      %v1174 = vpop.f32.mrf.mxu0
      %v1175 = vpop.f32.mrf.mxu0
      %v1176 = vadd.f32 %v1032, %v1175
      %v1177 = vpop.f32.mrf.mxu0
      %1178 = vmatprep.mubr.bf16.mxu0 0
      %1179 = vmatmul.mubr.bf16.gmra.mxu0 %v1109
      %v1180 = vpop.f32.mrf.mxu0
      %v1181 = vadd.f32 %v1036, %v1180
      %v1182 = vpop.f32.mrf.mxu0
      %v1183 = vpop.f32.mrf.mxu0
      %v1184 = vadd.f32 %v1040, %v1183
      %v1185 = vpop.f32.mrf.mxu0
      %1186 = vmatprep.mubr.bf16.mxu0 0
      %1187 = vmatmul.mubr.bf16.gmra.mxu0 %v1110
      %v1188 = vpop.f32.mrf.mxu0
      %v1189 = vadd.f32 %v1044, %v1188
      %v1190 = vpop.f32.mrf.mxu0
      %v1191 = vpop.f32.mrf.mxu0
      %v1192 = vadd.f32 %v1048, %v1191
      %v1193 = vpop.f32.mrf.mxu0
      %1194 = vmatprep.mubr.bf16.mxu0 0
      %1195 = vmatmul.mubr.bf16.gmra.mxu0 %v1111
      %v1196 = vpop.f32.mrf.mxu0
      %v1197 = vadd.f32 %v1052, %v1196
      %v1198 = vpop.f32.mrf.mxu0
      %v1199 = vpop.f32.mrf.mxu0
      %v1200 = vadd.f32 %v1056, %v1199
      %v1201 = vpop.f32.mrf.mxu0
      %1202 = vmatprep.mubr.bf16.mxu0 0
      %1203 = vmatmul.mubr.bf16.gmra.mxu0 %v1112
      %v1204 = vpop.f32.mrf.mxu0
      %v1205 = vadd.f32 %v1060, %v1204
      %v1206 = vpop.f32.mrf.mxu0
      %v1207 = vpop.f32.mrf.mxu0
      %v1208 = vadd.f32 %v1064, %v1207
      %v1209 = vpop.f32.mrf.mxu0
      %1210 = vmatprep.mubr.bf16.mxu0 0
      %1211 = vmatmul.mubr.bf16.gmra.mxu0 %v1113
      %v1212 = vpop.f32.mrf.mxu0
      %v1213 = vadd.f32 %v1068, %v1212
      %v1214 = vpop.f32.mrf.mxu0
      %v1215 = vpop.f32.mrf.mxu0
      %v1216 = vadd.f32 %v1072, %v1215
      %v1217 = vpop.f32.mrf.mxu0
      %1218 = vdwg.mxu0
      %v1219 = vmax.f32 %v1157, 0.0
      %v1220 = vmax.f32 %v1160, 0.0
      %v1221 = vmax.f32 %v1165, 0.0
      %v1222 = vmax.f32 %v1168, 0.0
      %v1223 = vmax.f32 %v1173, 0.0
      %v1224 = vmax.f32 %v1176, 0.0
      %v1225 = vmax.f32 %v1181, 0.0
      %v1226 = vmax.f32 %v1184, 0.0
      %v1227 = vmax.f32 %v1189, 0.0
      %v1228 = vmax.f32 %v1192, 0.0
      %v1229 = vmax.f32 %v1197, 0.0
      %v1230 = vmax.f32 %v1200, 0.0
      %v1231 = vmax.f32 %v1205, 0.0
      %v1232 = vmax.f32 %v1208, 0.0
      %v1233 = vmax.f32 %v1213, 0.0
      %v1234 = vmax.f32 %v1216, 0.0
      %v1235 = vpack.c.bf16 %v1220, %v1219
      %v1236 = vpack.c.bf16 %v1222, %v1221
      %v1237 = vpack.c.bf16 %v1224, %v1223
      %v1238 = vpack.c.bf16 %v1226, %v1225
      %v1239 = vpack.c.bf16 %v1228, %v1227
      %v1240 = vpack.c.bf16 %v1230, %v1229
      %v1241 = vpack.c.bf16 %v1232, %v1231
      %v1242 = vpack.c.bf16 %v1234, %v1233
      %s1243 = scalar_lea.vmem %s2, 128
      %v1244 = vld [vmem:[%s1243] sm:$0xf]
      %v1245 = vld [vmem:[%s1243 + $0x4] sm:$0xf]
      %v1246 = vld [vmem:[%s1243 + $0x8] sm:$0xf]
      %v1247 = vld [vmem:[%s1243 + $0xc] sm:$0xf]
      %v1248 = vld [vmem:[%s1243 + $0x10] sm:$0xf]
      %v1249 = vld [vmem:[%s1243 + $0x14] sm:$0xf]
      %v1250 = vld [vmem:[%s1243 + $0x18] sm:$0xf]
      %v1251 = vld [vmem:[%s1243 + $0x1c] sm:$0xf]
      %v1252 = vld [vmem:[%s1243 + $0x20] sm:$0xf]
      %v1253 = vld [vmem:[%s1243 + $0x24] sm:$0xf]
      %v1254 = vld [vmem:[%s1243 + $0x28] sm:$0xf]
      %v1255 = vld [vmem:[%s1243 + $0x2c] sm:$0xf]
      %v1256 = vld [vmem:[%s1243 + $0x30] sm:$0xf]
      %v1257 = vld [vmem:[%s1243 + $0x34] sm:$0xf]
      %v1258 = vld [vmem:[%s1243 + $0x38] sm:$0xf]
      %v1259 = vld [vmem:[%s1243 + $0x3c] sm:$0xf]
      %1260 = vset.pattern.permute.xlu0 3
      %1261 = vperm.xlu0 %1260, %v292
      %v1262 = vpop.permute.xlu0 %1261
      %1264 = vset.pattern.permute.xlu0 3
      %1265 = vperm.xlu0 %1264, %v293
      %v1266 = vpop.permute.xlu0 %1265
      %1268 = vset.pattern.permute.xlu0 3
      %1269 = vperm.xlu0 %1268, %v294
      %v1270 = vpop.permute.xlu0 %1269
      %1272 = vset.pattern.permute.xlu0 3
      %1273 = vperm.xlu0 %1272, %v295
      %v1274 = vpop.permute.xlu0 %1273
      %1276 = vset.pattern.permute.xlu0 3
      %1277 = vperm.xlu0 %1276, %v296
      %v1278 = vpop.permute.xlu0 %1277
      %1280 = vset.pattern.permute.xlu0 3
      %1281 = vperm.xlu0 %1280, %v297
      %v1282 = vpop.permute.xlu0 %1281
      %1284 = vset.pattern.permute.xlu0 3
      %1285 = vperm.xlu0 %1284, %v298
      %v1286 = vpop.permute.xlu0 %1285
      %1288 = vset.pattern.permute.xlu0 3
      %1289 = vperm.xlu0 %1288, %v299
      %v1290 = vpop.permute.xlu0 %1289
      %1292 = vset.pattern.permute.xlu0 3
      %1293 = vperm.xlu0 %1292, %v300
      %v1294 = vpop.permute.xlu0 %1293
      %1296 = vset.pattern.permute.xlu0 3
      %1297 = vperm.xlu0 %1296, %v301
      %v1298 = vpop.permute.xlu0 %1297
      %1300 = vset.pattern.permute.xlu0 3
      %1301 = vperm.xlu0 %1300, %v302
      %v1302 = vpop.permute.xlu0 %1301
      %1304 = vset.pattern.permute.xlu0 3
      %1305 = vperm.xlu0 %1304, %v303
      %v1306 = vpop.permute.xlu0 %1305
      %1308 = vset.pattern.permute.xlu0 3
      %1309 = vperm.xlu0 %1308, %v304
      %v1310 = vpop.permute.xlu0 %1309
      %1312 = vset.pattern.permute.xlu0 3
      %1313 = vperm.xlu0 %1312, %v305
      %v1314 = vpop.permute.xlu0 %1313
      %1316 = vset.pattern.permute.xlu0 3
      %1317 = vperm.xlu0 %1316, %v306
      %v1318 = vpop.permute.xlu0 %1317
      %1320 = vset.pattern.permute.xlu0 3
      %1321 = vperm.xlu0 %1320, %v307
      %v1322 = vpop.permute.xlu0 %1321
      %v1340 = vunpack.c.l.b16 %v1244
      %v1341 = vunpack.c.l.b16 %v1245
      %v1342 = vunpack.c.l.b16 %v1246
      %v1343 = vunpack.c.l.b16 %v1247
      %v1344 = vunpack.c.l.b16 %v1248
      %v1345 = vunpack.c.l.b16 %v1249
      %v1346 = vunpack.c.l.b16 %v1250
      %v1347 = vunpack.c.l.b16 %v1251
      %v1348 = vunpack.c.l.b16 %v1252
      %v1349 = vunpack.c.l.b16 %v1253
      %v1350 = vunpack.c.l.b16 %v1254
      %v1351 = vunpack.c.l.b16 %v1255
      %v1352 = vunpack.c.l.b16 %v1256
      %v1353 = vunpack.c.l.b16 %v1257
      %v1354 = vunpack.c.l.b16 %v1258
      %v1355 = vunpack.c.l.b16 %v1259
      %v1356 = vpack.c.b16 %v1341, %v1340
      %v1357 = vpack.c.b16 %v1343, %v1342
      %v1358 = vpack.c.b16 %v1345, %v1344
      %v1359 = vpack.c.b16 %v1347, %v1346
      %v1360 = vpack.c.b16 %v1349, %v1348
      %v1361 = vpack.c.b16 %v1351, %v1350
      %v1362 = vpack.c.b16 %v1353, %v1352
      %v1363 = vpack.c.b16 %v1355, %v1354
      %1372 = vmatprep.subr.bf16.mxu0 0
      %1373 = vmatpush1.bf16.msra.mxu0 %v1242
      %1374 = vmatprep.subr.bf16.mxu0 0
      %1375 = vmatpush1.bf16.msra.mxu0 %v1241
      %1376 = vmatprep.subr.bf16.mxu0 0
      %1377 = vmatpush1.bf16.msra.mxu0 %v1240
      %1378 = vmatprep.subr.bf16.mxu0 0
      %1379 = vmatpush1.bf16.msra.mxu0 %v1239
      %1380 = vmatprep.subr.bf16.mxu0 0
      %1381 = vmatpush1.bf16.msra.mxu0 %v1238
      %1382 = vmatprep.subr.bf16.mxu0 0
      %1383 = vmatpush1.bf16.msra.mxu0 %v1237
      %1384 = vmatprep.subr.bf16.mxu0 0
      %1385 = vmatpush1.bf16.msra.mxu0 %v1236
      %1386 = vmatprep.subr.bf16.mxu0 0
      %1387 = vmatpush1.bf16.msra.mxu0 %v1235
      %1388 = vmatprep.subr.bf16.mxu0 0
      %1389 = vmatpush2.bf16.msra.mxu0 0
      %1390 = vmatprep.subr.bf16.mxu0 0
      %1391 = vmatpush2.bf16.msra.mxu0 0
      %1392 = vmatprep.subr.bf16.mxu0 0
      %1393 = vmatpush2.bf16.msra.mxu0 0
      %1394 = vmatprep.subr.bf16.mxu0 0
      %1395 = vmatpush2.bf16.msra.mxu0 0
      %1396 = vmatprep.subr.bf16.mxu0 0
      %1397 = vmatpush2.bf16.msra.mxu0 0
      %1398 = vmatprep.subr.bf16.mxu0 0
      %1399 = vmatpush2.bf16.msra.mxu0 0
      %1400 = vmatprep.subr.bf16.mxu0 0
      %1401 = vmatpush2.bf16.msra.mxu0 0
      %1402 = vmatprep.subr.bf16.mxu0 0
      %1403 = vmatpush2.bf16.msra.mxu0 0
      %1404 = vmatprep.mubr.bf16.mxu0 0
      %1405 = vmatmul.mubr.bf16.gmra.mxu0 %v1356
      %v1406 = vpop.f32.mrf.mxu0
      %v1407 = vadd.f32 %v1262, %v1406
      %v1408 = vpop.f32.mrf.mxu0
      %v1409 = vpop.f32.mrf.mxu0
      %v1410 = vadd.f32 %v1266, %v1409
      %v1411 = vpop.f32.mrf.mxu0
      %1412 = vmatprep.mubr.bf16.mxu0 0
      %1413 = vmatmul.mubr.bf16.gmra.mxu0 %v1357
      %v1414 = vpop.f32.mrf.mxu0
      %v1415 = vadd.f32 %v1270, %v1414
      %v1416 = vpop.f32.mrf.mxu0
      %v1417 = vpop.f32.mrf.mxu0
      %v1418 = vadd.f32 %v1274, %v1417
      %v1419 = vpop.f32.mrf.mxu0
      %1420 = vmatprep.mubr.bf16.mxu0 0
      %1421 = vmatmul.mubr.bf16.gmra.mxu0 %v1358
      %v1422 = vpop.f32.mrf.mxu0
      %v1423 = vadd.f32 %v1278, %v1422
      %v1424 = vpop.f32.mrf.mxu0
      %v1425 = vpop.f32.mrf.mxu0
      %v1426 = vadd.f32 %v1282, %v1425
      %v1427 = vpop.f32.mrf.mxu0
      %1428 = vmatprep.mubr.bf16.mxu0 0
      %1429 = vmatmul.mubr.bf16.gmra.mxu0 %v1359
      %v1430 = vpop.f32.mrf.mxu0
      %v1431 = vadd.f32 %v1286, %v1430
      %v1432 = vpop.f32.mrf.mxu0
      %v1433 = vpop.f32.mrf.mxu0
      %v1434 = vadd.f32 %v1290, %v1433
      %v1435 = vpop.f32.mrf.mxu0
      %1436 = vmatprep.mubr.bf16.mxu0 0
      %1437 = vmatmul.mubr.bf16.gmra.mxu0 %v1360
      %v1438 = vpop.f32.mrf.mxu0
      %v1439 = vadd.f32 %v1294, %v1438
      %v1440 = vpop.f32.mrf.mxu0
      %v1441 = vpop.f32.mrf.mxu0
      %v1442 = vadd.f32 %v1298, %v1441
      %v1443 = vpop.f32.mrf.mxu0
      %1444 = vmatprep.mubr.bf16.mxu0 0
      %1445 = vmatmul.mubr.bf16.gmra.mxu0 %v1361
      %v1446 = vpop.f32.mrf.mxu0
      %v1447 = vadd.f32 %v1302, %v1446
      %v1448 = vpop.f32.mrf.mxu0
      %v1449 = vpop.f32.mrf.mxu0
      %v1450 = vadd.f32 %v1306, %v1449
      %v1451 = vpop.f32.mrf.mxu0
      %1452 = vmatprep.mubr.bf16.mxu0 0
      %1453 = vmatmul.mubr.bf16.gmra.mxu0 %v1362
      %v1454 = vpop.f32.mrf.mxu0
      %v1455 = vadd.f32 %v1310, %v1454
      %v1456 = vpop.f32.mrf.mxu0
      %v1457 = vpop.f32.mrf.mxu0
      %v1458 = vadd.f32 %v1314, %v1457
      %v1459 = vpop.f32.mrf.mxu0
      %1460 = vmatprep.mubr.bf16.mxu0 0
      %1461 = vmatmul.mubr.bf16.gmra.mxu0 %v1363
      %v1462 = vpop.f32.mrf.mxu0
      %v1463 = vadd.f32 %v1318, %v1462
      %v1464 = vpop.f32.mrf.mxu0
      %v1465 = vpop.f32.mrf.mxu0
      %v1466 = vadd.f32 %v1322, %v1465
      %v1467 = vpop.f32.mrf.mxu0
      %1468 = vdwg.mxu0
      %v1469 = vmax.f32 %v1407, 0.0
      %v1470 = vmax.f32 %v1410, 0.0
      %v1471 = vmax.f32 %v1415, 0.0
      %v1472 = vmax.f32 %v1418, 0.0
      %v1473 = vmax.f32 %v1423, 0.0
      %v1474 = vmax.f32 %v1426, 0.0
      %v1475 = vmax.f32 %v1431, 0.0
      %v1476 = vmax.f32 %v1434, 0.0
      %v1477 = vmax.f32 %v1439, 0.0
      %v1478 = vmax.f32 %v1442, 0.0
      %v1479 = vmax.f32 %v1447, 0.0
      %v1480 = vmax.f32 %v1450, 0.0
      %v1481 = vmax.f32 %v1455, 0.0
      %v1482 = vmax.f32 %v1458, 0.0
      %v1483 = vmax.f32 %v1463, 0.0
      %v1484 = vmax.f32 %v1466, 0.0
      %v1485 = vlaneseq
      %v1486 = vand.u32 %v1485, 127
      %s1487 = smul.u32 %s22, 128
      %v1488 = vstv %s1487
      %v1489 = vadd.s32 %v1486, %v1488
      %vm1490 = vcmp.lt.s32.totalorder %v1489, 4
      %v1491 = vsel %vm1490, 1, 0
      %vm1492 = vcmp.eq.s32.totalorder %v1491, 1
      %v1493 = vsel %vm1492, %v1469, 0.0
      %v1494 = vsel %vm1492, %v1470, 0.0
      %v1495 = vsel %vm1492, %v1471, 0.0
      %v1496 = vsel %vm1492, %v1472, 0.0
      %v1497 = vsel %vm1492, %v1473, 0.0
      %v1498 = vsel %vm1492, %v1474, 0.0
      %v1499 = vsel %vm1492, %v1475, 0.0
      %v1500 = vsel %vm1492, %v1476, 0.0
      %v1501 = vsel %vm1492, %v1477, 0.0
      %v1502 = vsel %vm1492, %v1478, 0.0
      %v1503 = vsel %vm1492, %v1479, 0.0
      %v1504 = vsel %vm1492, %v1480, 0.0
      %v1505 = vsel %vm1492, %v1481, 0.0
      %v1506 = vsel %vm1492, %v1482, 0.0
      %v1507 = vsel %vm1492, %v1483, 0.0
      %v1508 = vsel %vm1492, %v1484, 0.0
      %v1509 = vld [vmem:[#allocation2] sm:$0xff]
      %v1510 = vld [vmem:[#allocation2 + $0x8] sm:$0xff]
      %v1511 = vld [vmem:[#allocation2 + $0x10] sm:$0xff]
      %v1512 = vld [vmem:[#allocation2 + $0x18] sm:$0xff]
      %v1513 = vld [vmem:[#allocation2 + $0x20] sm:$0xff]
      %v1514 = vld [vmem:[#allocation2 + $0x28] sm:$0xff]
      %v1515 = vld [vmem:[#allocation2 + $0x30] sm:$0xff]
      %v1516 = vld [vmem:[#allocation2 + $0x38] sm:$0xff]
      %v1517 = vld [vmem:[#allocation2 + $0x40] sm:$0xff]
      %v1518 = vld [vmem:[#allocation2 + $0x48] sm:$0xff]
      %v1519 = vld [vmem:[#allocation2 + $0x50] sm:$0xff]
      %v1520 = vld [vmem:[#allocation2 + $0x58] sm:$0xff]
      %v1521 = vld [vmem:[#allocation2 + $0x60] sm:$0xff]
      %v1522 = vld [vmem:[#allocation2 + $0x68] sm:$0xff]
      %v1523 = vld [vmem:[#allocation2 + $0x70] sm:$0xff]
      %v1524 = vld [vmem:[#allocation2 + $0x78] sm:$0xff]
      %1525 = vadd.xlane.f32.xlu0 %v1493
      %v1526 = vpop.xlane.xlu0 %1525
      %1527 = vadd.xlane.f32.xlu0 %v1494
      %v1528 = vpop.xlane.xlu0 %1527
      %1529 = vadd.xlane.f32.xlu0 %v1495
      %v1530 = vpop.xlane.xlu0 %1529
      %1531 = vadd.xlane.f32.xlu0 %v1496
      %v1532 = vpop.xlane.xlu0 %1531
      %1533 = vadd.xlane.f32.xlu0 %v1497
      %v1534 = vpop.xlane.xlu0 %1533
      %1535 = vadd.xlane.f32.xlu0 %v1498
      %v1536 = vpop.xlane.xlu0 %1535
      %1537 = vadd.xlane.f32.xlu0 %v1499
      %v1538 = vpop.xlane.xlu0 %1537
      %1539 = vadd.xlane.f32.xlu0 %v1500
      %v1540 = vpop.xlane.xlu0 %1539
      %1541 = vadd.xlane.f32.xlu0 %v1501
      %v1542 = vpop.xlane.xlu0 %1541
      %1543 = vadd.xlane.f32.xlu0 %v1502
      %v1544 = vpop.xlane.xlu0 %1543
      %1545 = vadd.xlane.f32.xlu0 %v1503
      %v1546 = vpop.xlane.xlu0 %1545
      %1547 = vadd.xlane.f32.xlu0 %v1504
      %v1548 = vpop.xlane.xlu0 %1547
      %1549 = vadd.xlane.f32.xlu0 %v1505
      %v1550 = vpop.xlane.xlu0 %1549
      %1551 = vadd.xlane.f32.xlu0 %v1506
      %v1552 = vpop.xlane.xlu0 %1551
      %1553 = vadd.xlane.f32.xlu0 %v1507
      %v1554 = vpop.xlane.xlu0 %1553
      %1555 = vadd.xlane.f32.xlu0 %v1508
      %v1556 = vpop.xlane.xlu0 %1555
      %v1557 = vadd.f32 %v1509, %v1526
      %v1558 = vadd.f32 %v1510, %v1528
      %v1559 = vadd.f32 %v1511, %v1530
      %v1560 = vadd.f32 %v1512, %v1532
      %v1561 = vadd.f32 %v1513, %v1534
      %v1562 = vadd.f32 %v1514, %v1536
      %v1563 = vadd.f32 %v1515, %v1538
      %v1564 = vadd.f32 %v1516, %v1540
      %v1565 = vadd.f32 %v1517, %v1542
      %v1566 = vadd.f32 %v1518, %v1544
      %v1567 = vadd.f32 %v1519, %v1546
      %v1568 = vadd.f32 %v1520, %v1548
      %v1569 = vadd.f32 %v1521, %v1550
      %v1570 = vadd.f32 %v1522, %v1552
      %v1571 = vadd.f32 %v1523, %v1554
      %v1572 = vadd.f32 %v1524, %v1556
      %vm1573 = vcmask 7168
      %1574 = vst.msk [vmem:[#allocation2] sm:$0xff] %vm1573, %v1557
      %1575 = vst.msk [vmem:[#allocation2 + $0x8] sm:$0xff] %vm1573, %v1558
      %1576 = vst.msk [vmem:[#allocation2 + $0x10] sm:$0xff] %vm1573, %v1559
      %1577 = vst.msk [vmem:[#allocation2 + $0x18] sm:$0xff] %vm1573, %v1560
      %1578 = vst.msk [vmem:[#allocation2 + $0x20] sm:$0xff] %vm1573, %v1561
      %1579 = vst.msk [vmem:[#allocation2 + $0x28] sm:$0xff] %vm1573, %v1562
      %1580 = vst.msk [vmem:[#allocation2 + $0x30] sm:$0xff] %vm1573, %v1563
      %1581 = vst.msk [vmem:[#allocation2 + $0x38] sm:$0xff] %vm1573, %v1564
      %1582 = vst.msk [vmem:[#allocation2 + $0x40] sm:$0xff] %vm1573, %v1565
      %1583 = vst.msk [vmem:[#allocation2 + $0x48] sm:$0xff] %vm1573, %v1566
      %1584 = vst.msk [vmem:[#allocation2 + $0x50] sm:$0xff] %vm1573, %v1567
      %1585 = vst.msk [vmem:[#allocation2 + $0x58] sm:$0xff] %vm1573, %v1568
      %1586 = vst.msk [vmem:[#allocation2 + $0x60] sm:$0xff] %vm1573, %v1569
      %1587 = vst.msk [vmem:[#allocation2 + $0x68] sm:$0xff] %vm1573, %v1570
      %1588 = vst.msk [vmem:[#allocation2 + $0x70] sm:$0xff] %vm1573, %v1571
      %1589 = vst.msk [vmem:[#allocation2 + $0x78] sm:$0xff] %vm1573, %v1572
      // Predicated region
      $region49: #{sartorius_forward.1} parent=43 // pred_check
        %p1590 = pneg %p269
      $region50: #{sartorius_forward.1} parent=43 // pred_check_branch
        %1592 = sbr.rel (%p1590) target = $region52
      $region51: #{sartorius_forward.1} parent=43 // pred_region
        %v1593 = vld [vmem:[#allocation2] sm:$0xff]
        %v1594 = vld [vmem:[#allocation2 + $0x8] sm:$0xff]
        %v1595 = vld [vmem:[#allocation2 + $0x10] sm:$0xff]
        %v1596 = vld [vmem:[#allocation2 + $0x18] sm:$0xff]
        %v1597 = vld [vmem:[#allocation2 + $0x20] sm:$0xff]
        %v1598 = vld [vmem:[#allocation2 + $0x28] sm:$0xff]
        %v1599 = vld [vmem:[#allocation2 + $0x30] sm:$0xff]
        %v1600 = vld [vmem:[#allocation2 + $0x38] sm:$0xff]
        %v1601 = vld [vmem:[#allocation2 + $0x40] sm:$0xff]
        %v1602 = vld [vmem:[#allocation2 + $0x48] sm:$0xff]
        %v1603 = vld [vmem:[#allocation2 + $0x50] sm:$0xff]
        %v1604 = vld [vmem:[#allocation2 + $0x58] sm:$0xff]
        %v1605 = vld [vmem:[#allocation2 + $0x60] sm:$0xff]
        %v1606 = vld [vmem:[#allocation2 + $0x68] sm:$0xff]
        %v1607 = vld [vmem:[#allocation2 + $0x70] sm:$0xff]
        %v1608 = vld [vmem:[#allocation2 + $0x78] sm:$0xff]
        %v1609 = vmul.f32 %v1593, 0.25
        %v1610 = vmul.f32 %v1594, 0.25
        %v1611 = vmul.f32 %v1595, 0.25
        %v1612 = vmul.f32 %v1596, 0.25
        %v1613 = vmul.f32 %v1597, 0.25
        %v1614 = vmul.f32 %v1598, 0.25
        %v1615 = vmul.f32 %v1599, 0.25
        %v1616 = vmul.f32 %v1600, 0.25
        %v1617 = vmul.f32 %v1601, 0.25
        %v1618 = vmul.f32 %v1602, 0.25
        %v1619 = vmul.f32 %v1603, 0.25
        %v1620 = vmul.f32 %v1604, 0.25
        %v1621 = vmul.f32 %v1605, 0.25
        %v1622 = vmul.f32 %v1606, 0.25
        %v1623 = vmul.f32 %v1607, 0.25
        %v1624 = vmul.f32 %v1608, 0.25
        %v1625 = vld [vmem:[%s4] sm:$0xff]
        %v1626 = vld [vmem:[%s4 + $0x8] sm:$0xff]
        %v1627 = vld [vmem:[%s4 + $0x10] sm:$0xff]
        %v1628 = vld [vmem:[%s4 + $0x18] sm:$0xff]
        %v1629 = vld [vmem:[%s4 + $0x20] sm:$0xff]
        %v1630 = vld [vmem:[%s4 + $0x28] sm:$0xff]
        %v1631 = vld [vmem:[%s4 + $0x30] sm:$0xff]
        %v1632 = vld [vmem:[%s4 + $0x38] sm:$0xff]
        %v1633 = vld [vmem:[%s4 + $0x40] sm:$0xff]
        %v1634 = vld [vmem:[%s4 + $0x48] sm:$0xff]
        %v1635 = vld [vmem:[%s4 + $0x50] sm:$0xff]
        %v1636 = vld [vmem:[%s4 + $0x58] sm:$0xff]
        %v1637 = vld [vmem:[%s4 + $0x60] sm:$0xff]
        %v1638 = vld [vmem:[%s4 + $0x68] sm:$0xff]
        %v1639 = vld [vmem:[%s4 + $0x70] sm:$0xff]
        %v1640 = vld [vmem:[%s4 + $0x78] sm:$0xff]
        %1642 = vset.pattern.permute.xlu0 0
        %1643 = vperm.xlu0 %1642, %v1609
        %v1644 = vpop.permute.xlu0 %1643
        %1647 = vset.pattern.permute.xlu0 0
        %1648 = vperm.xlu0 %1647, %v1610
        %v1649 = vpop.permute.xlu0 %1648
        %1652 = vset.pattern.permute.xlu0 0
        %1653 = vperm.xlu0 %1652, %v1611
        %v1654 = vpop.permute.xlu0 %1653
        %1657 = vset.pattern.permute.xlu0 0
        %1658 = vperm.xlu0 %1657, %v1612
        %v1659 = vpop.permute.xlu0 %1658
        %1662 = vset.pattern.permute.xlu0 0
        %1663 = vperm.xlu0 %1662, %v1613
        %v1664 = vpop.permute.xlu0 %1663
        %1667 = vset.pattern.permute.xlu0 0
        %1668 = vperm.xlu0 %1667, %v1614
        %v1669 = vpop.permute.xlu0 %1668
        %1672 = vset.pattern.permute.xlu0 0
        %1673 = vperm.xlu0 %1672, %v1615
        %v1674 = vpop.permute.xlu0 %1673
        %1677 = vset.pattern.permute.xlu0 0
        %1678 = vperm.xlu0 %1677, %v1616
        %v1679 = vpop.permute.xlu0 %1678
        %1682 = vset.pattern.permute.xlu0 0
        %1683 = vperm.xlu0 %1682, %v1617
        %v1684 = vpop.permute.xlu0 %1683
        %1687 = vset.pattern.permute.xlu0 0
        %1688 = vperm.xlu0 %1687, %v1618
        %v1689 = vpop.permute.xlu0 %1688
        %1692 = vset.pattern.permute.xlu0 0
        %1693 = vperm.xlu0 %1692, %v1619
        %v1694 = vpop.permute.xlu0 %1693
        %1697 = vset.pattern.permute.xlu0 0
        %1698 = vperm.xlu0 %1697, %v1620
        %v1699 = vpop.permute.xlu0 %1698
        %1702 = vset.pattern.permute.xlu0 0
        %1703 = vperm.xlu0 %1702, %v1621
        %v1704 = vpop.permute.xlu0 %1703
        %1707 = vset.pattern.permute.xlu0 0
        %1708 = vperm.xlu0 %1707, %v1622
        %v1709 = vpop.permute.xlu0 %1708
        %1712 = vset.pattern.permute.xlu0 0
        %1713 = vperm.xlu0 %1712, %v1623
        %v1714 = vpop.permute.xlu0 %1713
        %1717 = vset.pattern.permute.xlu0 0
        %1718 = vperm.xlu0 %1717, %v1624
        %v1719 = vpop.permute.xlu0 %1718
        %v1721 = vmul.f32 %v1625, %v1644
        %v1722 = vmul.f32 %v1626, %v1649
        %v1723 = vmul.f32 %v1627, %v1654
        %v1724 = vmul.f32 %v1628, %v1659
        %v1725 = vmul.f32 %v1629, %v1664
        %v1726 = vmul.f32 %v1630, %v1669
        %v1727 = vmul.f32 %v1631, %v1674
        %v1728 = vmul.f32 %v1632, %v1679
        %v1729 = vmul.f32 %v1633, %v1684
        %v1730 = vmul.f32 %v1634, %v1689
        %v1731 = vmul.f32 %v1635, %v1694
        %v1732 = vmul.f32 %v1636, %v1699
        %v1733 = vmul.f32 %v1637, %v1704
        %v1734 = vmul.f32 %v1638, %v1709
        %v1735 = vmul.f32 %v1639, %v1714
        %v1736 = vmul.f32 %v1640, %v1719
        %v1737 = vadd.f32 %v1721, %v1722
        %v1738 = vadd.f32 %v1737, %v1723
        %v1739 = vadd.f32 %v1738, %v1724
        %v1740 = vadd.f32 %v1739, %v1725
        %v1741 = vadd.f32 %v1740, %v1726
        %v1742 = vadd.f32 %v1741, %v1727
        %v1743 = vadd.f32 %v1742, %v1728
        %v1744 = vadd.f32 %v1743, %v1729
        %v1745 = vadd.f32 %v1744, %v1730
        %v1746 = vadd.f32 %v1745, %v1731
        %v1747 = vadd.f32 %v1746, %v1732
        %v1748 = vadd.f32 %v1747, %v1733
        %v1749 = vadd.f32 %v1748, %v1734
        %v1750 = vadd.f32 %v1749, %v1735
        %v1751 = vadd.f32 %v1750, %v1736
        %v1752 = vrot.slane %v1751, 4
        %v1753 = vadd.f32 %v1751, %v1752
        %v1754 = vrot.slane %v1753, 2
        %v1755 = vadd.f32 %v1753, %v1754
        %v1756 = vrot.slane %v1755, 1
        %v1757 = vadd.f32 %v1755, %v1756
        %v1758 = vld [vmem:[%s5] sm:$0x1]
        %v1759 = vadd.f32 %v1757, %v1758
        %1760 = vst [vmem:[%s267] sm:$0x1] %v1759
      $region52: #{sartorius_forward.1} parent=43 // pred_fallthru
        _
      %p1761 = scmp.lt.s32.totalorder %s21, 1
      %s1762 = scalar_select %p1761, %s21, 1
      %s1763 = scalar_lea.vmem %s6, %s1762
      // Predicated region
      $region53: #{sartorius_forward.1} parent=43 // pred_check
        %p1764 = pneg %p180
      $region54: #{sartorius_forward.1} parent=43 // pred_check_branch
        %1766 = sbr.rel (%p1764) target = $region56
      $region55: #{sartorius_forward.1} parent=43 // pred_region
        _
      $region56: #{sartorius_forward.1} parent=43 // pred_fallthru
        _
    $region44: #{sartorius_forward.1} parent=5 // pred_fallthru
      _
    %p1767 = scmp.le.s32.totalorder 2, %s12
    // Predicated region
    $region57: #{sartorius_forward.1} parent=5 // pred_check
      %p1768 = pneg %p1767
    $region58: #{sartorius_forward.1} parent=5 // pred_check_branch
      %1770 = sbr.rel (%p1768) target = $region60
    $region59: #{sartorius_forward.1} parent=5 // pred_region
      %s1771 = ssub.s32 %s12, 2
      // Predicated region
      $region61: #{sartorius_forward.1} parent=59 // pred_check
        %p1772 = pneg %p186
      $region62: #{sartorius_forward.1} parent=59 // pred_check_branch
        %1774 = sbr.rel (%p1772) target = $region64
      $region63: #{sartorius_forward.1} parent=59 // pred_region
        %p1775 = scmp.lt.s32.totalorder %s23, 1
        %s1776 = scalar_select %p1775, %s23, 1
        %s1777 = scalar_lea.vmem %s6, %s1776
      $region64: #{sartorius_forward.1} parent=59 // pred_fallthru
        _
    $region60: #{sartorius_forward.1} parent=5 // pred_fallthru
      _
  $region6: #{sartorius_forward.1} parent=0 // loop_footer
    %s16 = sadd.s32 1, %s12
  $region7: #{sartorius_forward.1} parent=0 // loop_footer_branch
    %11 = sbr.rel target = $region3
  $region8: #{sartorius_forward.1} parent=0 // loop_exit
    _

</llo_original>
